<compile_context>
chip_gen: v6e
topology: v6e:2x2x1
jax: 0.10.0
libtpu: 0.0.40
codegen_flags: <defaults>
</compile_context>

<pallas_src>
import functools

import jax
import jax.numpy as jnp
from jax.experimental import pallas as pl
from jax.experimental.pallas import tpu as pltpu

IN_DIM = 27          # original feature count
IN_PAD = 32          # padded (sublane-friendly) feature count
WIDTH = 512
OUT_DIM = 2          # original output count
OUT_PAD = 128        # lane-dense padded output count
TILE_B_MAX = 256     # batch tile (multiple of 128 when batch is large)


def _round_up(x, m):
    return ((x + m - 1) // m) * m


def titanic_mlp_kernel(x_ref,
                       w1_ref, b1_ref,
                       w2_ref, b2_ref,
                       w3_ref, b3_ref,
                       w4_ref, b4_ref,
                       o_ref):
    """Fused 4-layer MLP on one batch tile: 4 MXU matmuls + VPU relu.

    Weights are bf16, accumulation is f32, intermediate activations are cast
    back to bf16 before the next matmul (halves vreg->MXU traffic).
    """
    x = x_ref[...]  # bf16 [tile_b, IN_PAD]

    h = jnp.dot(x, w1_ref[...], preferred_element_type=jnp.float32) + b1_ref[...]
    h = jnp.maximum(h, 0.0).astype(jnp.bfloat16)

    h = jnp.dot(h, w2_ref[...], preferred_element_type=jnp.float32) + b2_ref[...]
    h = jnp.maximum(h, 0.0).astype(jnp.bfloat16)

    h = jnp.dot(h, w3_ref[...], preferred_element_type=jnp.float32) + b3_ref[...]
    h = jnp.maximum(h, 0.0).astype(jnp.bfloat16)

    out = jnp.dot(h, w4_ref[...], preferred_element_type=jnp.float32) + b4_ref[...]
    o_ref[...] = out.astype(o_ref.dtype)   # f32, lane-dense [tile_b, OUT_PAD]


def prepare_params(raw_params):
    """One-time host-side prep: pad to TPU-friendly shapes, cast weights to bf16.

    raw_params: [(w[in,out] f32, b[1,out] f32)] with natural shapes
                (27,512), (512,512), (512,512), (512,2).
    """
    (w1, b1), (w2, b2), (w3, b3), (w4, b4) = raw_params

    # Pad K: 27 -> 32 on the first layer (zero rows => identical math).
    w1p = jnp.zeros((IN_PAD, WIDTH), jnp.float32).at[:IN_DIM, :].set(w1)
    # Pad N: 2 -> 128 on the last layer (extra columns sliced off later).
    w4p = jnp.zeros((WIDTH, OUT_PAD), jnp.float32).at[:, :OUT_DIM].set(w4)
    b4p = jnp.zeros((1, OUT_PAD), jnp.float32).at[:, :OUT_DIM].set(b4)

    return (
        (w1p.astype(jnp.bfloat16), b1.astype(jnp.float32)),
        (w2.astype(jnp.bfloat16), b2.astype(jnp.float32)),
        (w3.astype(jnp.bfloat16), b3.astype(jnp.float32)),
        (w4p.astype(jnp.bfloat16), b4p.astype(jnp.float32)),
    )


@functools.partial(jax.jit, static_argnames=())
def titanic_network_forward(x, prepared_params):
    """Runs the fused MLP Pallas kernel on [batch, 27] f32 input."""
    (w1, b1), (w2, b2), (w3, b3), (w4, b4) = prepared_params
    batch = x.shape[0]

    # Batch tile: multiple of 16 (bf16 sublane packing), capped at TILE_B_MAX.
    tile_b = min(TILE_B_MAX, _round_up(batch, 16))
    padded_b = _round_up(batch, tile_b)

    # Trace-time padding: features 27 -> 32, batch -> tile multiple.
    x_pad = jnp.zeros((padded_b, IN_PAD), jnp.bfloat16)
    x_pad = x_pad.at[:batch, :IN_DIM].set(x.astype(jnp.bfloat16))

    grid = (padded_b // tile_b,)

    # Batch-tiled input / output; weights & biases resident (constant index_map
    # => DMA'd once, reused across all batch tiles).
    resident = lambda i: (0, 0)
    in_specs = [
        pl.BlockSpec((tile_b, IN_PAD), lambda i: (i, 0)),
        pl.BlockSpec((IN_PAD, WIDTH), resident),
        pl.BlockSpec((1, WIDTH), resident),
        pl.BlockSpec((WIDTH, WIDTH), resident),
        pl.BlockSpec((1, WIDTH), resident),
        pl.BlockSpec((WIDTH, WIDTH), resident),
        pl.BlockSpec((1, WIDTH), resident),
        pl.BlockSpec((WIDTH, OUT_PAD), resident),
        pl.BlockSpec((1, OUT_PAD), resident),
    ]
    out_specs = pl.BlockSpec((tile_b, OUT_PAD), lambda i: (i, 0))

    flops = 2 * padded_b * (IN_PAD * WIDTH + 2 * WIDTH * WIDTH + WIDTH * OUT_PAD)
    weight_bytes = 2 * (IN_PAD * WIDTH + 2 * WIDTH * WIDTH + WIDTH * OUT_PAD)  # bf16
    bias_bytes = 4 * (3 * WIDTH + OUT_PAD)                                      # f32
    act_bytes = padded_b * (2 * IN_PAD + 4 * OUT_PAD)                           # x bf16 + out f32
    cost = pl.CostEstimate(flops=flops, transcendentals=0,
                           bytes_accessed=weight_bytes + bias_bytes + act_bytes)

    out_padded = pl.pallas_call(
        titanic_mlp_kernel,
        out_shape=jax.ShapeDtypeStruct((padded_b, OUT_PAD), jnp.float32),
        grid=grid,
        in_specs=in_specs,
        out_specs=out_specs,
        compiler_params=pltpu.CompilerParams(
            dimension_semantics=("parallel",),  # v7x dual-TC batch sharding
        ),
        cost_estimate=cost,
    )(x_pad, w1, b1, w2, b2, w3, b3, w4, b4)

    return out_padded[:batch, :OUT_DIM]


def init_params(key, start=IN_DIM, width=WIDTH, out=OUT_DIM):
    """Deterministic synthetic init (mimics torch.nn.Linear default scale), f32."""
    dims = [(start, width), (width, width), (width, width), (width, out)]
    params = []
    for i, (fan_in, fan_out) in enumerate(dims):
        k_w, k_b = jax.random.split(jax.random.fold_in(key, i))
        bound = 1.0 / jnp.sqrt(fan_in)
        # Stored as [in, out] (transposed relative to torch's [out, in]).
        w = jax.random.uniform(k_w, (fan_in, fan_out), jnp.float32, -bound, bound)
        b = jax.random.uniform(k_b, (1, fan_out), jnp.float32, -bound, bound)
        params.append((w, b))
    return params


def reference_forward(x, raw_params):
    """Pure-JAX f32 reference of the same forward pass (correctness check)."""
    (w1, b1), (w2, b2), (w3, b3), (w4, b4) = raw_params
    h = jnp.maximum(x @ w1 + b1, 0.0)
    h = jnp.maximum(h @ w2 + b2, 0.0)
    h = jnp.maximum(h @ w3 + b3, 0.0)
    return h @ w4 + b4


if __name__ == "__main__":
    key = jax.random.PRNGKey(0)
    k_x, k_p = jax.random.split(key)

    batch = 8
    x = jax.random.normal(k_x, (batch, IN_DIM), dtype=jnp.float32)

    raw_params = init_params(k_p)
    prepared = prepare_params(raw_params)

    out = titanic_network_forward(x, prepared)
    out = jax.block_until_ready(out)

    ref = reference_forward(x, raw_params)
    assert out.shape == (batch, OUT_DIM)
    # bf16 weights/activations (f32 accumulation) => relaxed tolerance vs f32 ref.
    assert jnp.allclose(out, ref, atol=3e-2, rtol=3e-2), (
        f"max abs err {jnp.max(jnp.abs(out - ref))}")

    print("KERNEL_OK")
</pallas_src>

<mosaic_0001>
module attributes {stable_mosaic.version = 11 : i64} {
  func.func @titanic_mlp_kernel(%arg0: i32, %arg1: memref<16x32xbf16, #tpu.memory_space<vmem>>, %arg2: memref<32x512xbf16, #tpu.memory_space<vmem>>, %arg3: memref<1x512xf32, #tpu.memory_space<vmem>>, %arg4: memref<512x512xbf16, #tpu.memory_space<vmem>>, %arg5: memref<1x512xf32, #tpu.memory_space<vmem>>, %arg6: memref<512x512xbf16, #tpu.memory_space<vmem>>, %arg7: memref<1x512xf32, #tpu.memory_space<vmem>>, %arg8: memref<512x128xbf16, #tpu.memory_space<vmem>>, %arg9: memref<1x128xf32, #tpu.memory_space<vmem>>, %arg10: memref<16x128xf32, #tpu.memory_space<vmem>>) attributes {dimension_semantics = [#tpu.dimension_semantics<parallel>], iteration_bounds = array<i64: 1>, scalar_prefetch = 0 : i64, scratch_operands = 0 : i64, tpu.core_type = #tpu.core_type<tc>, window_params = [{transform_indices = @transform_0, window_bounds = array<i64: 16, 32>}, {pipeline_mode = #tpu.pipeline_mode<synchronous>, transform_indices = @transform_1, window_bounds = array<i64: 32, 512>}, {pipeline_mode = #tpu.pipeline_mode<synchronous>, transform_indices = @transform_2, window_bounds = array<i64: 1, 512>}, {pipeline_mode = #tpu.pipeline_mode<synchronous>, transform_indices = @transform_3, window_bounds = array<i64: 512, 512>}, {pipeline_mode = #tpu.pipeline_mode<synchronous>, transform_indices = @transform_4, window_bounds = array<i64: 1, 512>}, {pipeline_mode = #tpu.pipeline_mode<synchronous>, transform_indices = @transform_5, window_bounds = array<i64: 512, 512>}, {pipeline_mode = #tpu.pipeline_mode<synchronous>, transform_indices = @transform_6, window_bounds = array<i64: 1, 512>}, {pipeline_mode = #tpu.pipeline_mode<synchronous>, transform_indices = @transform_7, window_bounds = array<i64: 512, 128>}, {pipeline_mode = #tpu.pipeline_mode<synchronous>, transform_indices = @transform_8, window_bounds = array<i64: 1, 128>}, {transform_indices = @transform_9, window_bounds = array<i64: 16, 128>}]} {
    %c0 = arith.constant 0 : index
    %c0_0 = arith.constant 0 : index
    %0 = vector.load %arg1[%c0, %c0_0] : memref<16x32xbf16, #tpu.memory_space<vmem>>, vector<16x32xbf16>
    %c0_1 = arith.constant 0 : index
    %c0_2 = arith.constant 0 : index
    %1 = vector.load %arg2[%c0_1, %c0_2] : memref<32x512xbf16, #tpu.memory_space<vmem>>, vector<32x512xbf16>
    %cst = arith.constant dense<0.000000e+00> : vector<16x512xf32>
    %2 = tpu.matmul %0, %1, %cst {dimension_numbers = #tpu.dot_dimension_numbers<[1], [0], [0], [1], [0, 0, 1, 1], [], []>} : vector<16x32xbf16>, vector<32x512xbf16>, vector<16x512xf32> -> vector<16x512xf32>
    %c0_3 = arith.constant 0 : index
    %c0_4 = arith.constant 0 : index
    %3 = vector.load %arg3[%c0_3, %c0_4] : memref<1x512xf32, #tpu.memory_space<vmem>>, vector<1x512xf32>
    %4 = vector.broadcast %3 : vector<1x512xf32> to vector<16x512xf32>
    %5 = arith.addf %2, %4 : vector<16x512xf32>
    %cst_5 = arith.constant 0.000000e+00 : f32
    %6 = vector.broadcast %cst_5 : f32 to vector<16x512xf32>
    %7 = arith.maximumf %5, %6 : vector<16x512xf32>
    %8 = arith.truncf %7 : vector<16x512xf32> to vector<16x512xbf16>
    %c0_6 = arith.constant 0 : index
    %c0_7 = arith.constant 0 : index
    %9 = vector.load %arg4[%c0_6, %c0_7] : memref<512x512xbf16, #tpu.memory_space<vmem>>, vector<512x512xbf16>
    %cst_8 = arith.constant dense<0.000000e+00> : vector<16x512xf32>
    %10 = tpu.matmul %8, %9, %cst_8 {dimension_numbers = #tpu.dot_dimension_numbers<[1], [0], [0], [1], [0, 0, 1, 1], [], []>} : vector<16x512xbf16>, vector<512x512xbf16>, vector<16x512xf32> -> vector<16x512xf32>
    %c0_9 = arith.constant 0 : index
    %c0_10 = arith.constant 0 : index
    %11 = vector.load %arg5[%c0_9, %c0_10] : memref<1x512xf32, #tpu.memory_space<vmem>>, vector<1x512xf32>
    %12 = vector.broadcast %11 : vector<1x512xf32> to vector<16x512xf32>
    %13 = arith.addf %10, %12 : vector<16x512xf32>
    %cst_11 = arith.constant 0.000000e+00 : f32
    %14 = vector.broadcast %cst_11 : f32 to vector<16x512xf32>
    %15 = arith.maximumf %13, %14 : vector<16x512xf32>
    %16 = arith.truncf %15 : vector<16x512xf32> to vector<16x512xbf16>
    %c0_12 = arith.constant 0 : index
    %c0_13 = arith.constant 0 : index
    %17 = vector.load %arg6[%c0_12, %c0_13] : memref<512x512xbf16, #tpu.memory_space<vmem>>, vector<512x512xbf16>
    %cst_14 = arith.constant dense<0.000000e+00> : vector<16x512xf32>
    %18 = tpu.matmul %16, %17, %cst_14 {dimension_numbers = #tpu.dot_dimension_numbers<[1], [0], [0], [1], [0, 0, 1, 1], [], []>} : vector<16x512xbf16>, vector<512x512xbf16>, vector<16x512xf32> -> vector<16x512xf32>
    %c0_15 = arith.constant 0 : index
    %c0_16 = arith.constant 0 : index
    %19 = vector.load %arg7[%c0_15, %c0_16] : memref<1x512xf32, #tpu.memory_space<vmem>>, vector<1x512xf32>
    %20 = vector.broadcast %19 : vector<1x512xf32> to vector<16x512xf32>
    %21 = arith.addf %18, %20 : vector<16x512xf32>
    %cst_17 = arith.constant 0.000000e+00 : f32
    %22 = vector.broadcast %cst_17 : f32 to vector<16x512xf32>
    %23 = arith.maximumf %21, %22 : vector<16x512xf32>
    %24 = arith.truncf %23 : vector<16x512xf32> to vector<16x512xbf16>
    %c0_18 = arith.constant 0 : index
    %c0_19 = arith.constant 0 : index
    %25 = vector.load %arg8[%c0_18, %c0_19] : memref<512x128xbf16, #tpu.memory_space<vmem>>, vector<512x128xbf16>
    %cst_20 = arith.constant dense<0.000000e+00> : vector<16x128xf32>
    %26 = tpu.matmul %24, %25, %cst_20 {dimension_numbers = #tpu.dot_dimension_numbers<[1], [0], [0], [1], [0, 0, 1, 1], [], []>} : vector<16x512xbf16>, vector<512x128xbf16>, vector<16x128xf32> -> vector<16x128xf32>
    %c0_21 = arith.constant 0 : index
    %c0_22 = arith.constant 0 : index
    %27 = vector.load %arg9[%c0_21, %c0_22] : memref<1x128xf32, #tpu.memory_space<vmem>>, vector<1x128xf32>
    %28 = vector.broadcast %27 : vector<1x128xf32> to vector<16x128xf32>
    %29 = arith.addf %26, %28 : vector<16x128xf32>
    %c0_23 = arith.constant 0 : index
    %c0_24 = arith.constant 0 : index
    %30 = vector.load %arg10[%c0_23, %c0_24] : memref<16x128xf32, #tpu.memory_space<vmem>>, vector<16x128xf32>
    tpu.vector_store %arg10[%c0_23, %c0_24], %29 {strides = array<i32>} : memref<16x128xf32, #tpu.memory_space<vmem>>, vector<16x128xf32>,
    return
  }
  func.func @transform_0(%arg0: i32) -> (i32, i32) {
    %c0_i32 = arith.constant 0 : i32
    %c0_i32_0 = arith.constant 0 : i32
    return %arg0, %c0_i32 : i32, i32
  }
  func.func @transform_1(%arg0: i32) -> (i32, i32) {
    %c0_i32 = arith.constant 0 : i32
    %c0_i32_0 = arith.constant 0 : i32
    %c0_i32_1 = arith.constant 0 : i32
    return %c0_i32, %c0_i32_0 : i32, i32
  }
  func.func @transform_2(%arg0: i32) -> (i32, i32) {
    %c0_i32 = arith.constant 0 : i32
    %c0_i32_0 = arith.constant 0 : i32
    %c0_i32_1 = arith.constant 0 : i32
    return %c0_i32, %c0_i32_0 : i32, i32
  }
  func.func @transform_3(%arg0: i32) -> (i32, i32) {
    %c0_i32 = arith.constant 0 : i32
    %c0_i32_0 = arith.constant 0 : i32
    %c0_i32_1 = arith.constant 0 : i32
    return %c0_i32, %c0_i32_0 : i32, i32
  }
  func.func @transform_4(%arg0: i32) -> (i32, i32) {
    %c0_i32 = arith.constant 0 : i32
    %c0_i32_0 = arith.constant 0 : i32
    %c0_i32_1 = arith.constant 0 : i32
    return %c0_i32, %c0_i32_0 : i32, i32
  }
  func.func @transform_5(%arg0: i32) -> (i32, i32) {
    %c0_i32 = arith.constant 0 : i32
    %c0_i32_0 = arith.constant 0 : i32
    %c0_i32_1 = arith.constant 0 : i32
    return %c0_i32, %c0_i32_0 : i32, i32
  }
  func.func @transform_6(%arg0: i32) -> (i32, i32) {
    %c0_i32 = arith.constant 0 : i32
    %c0_i32_0 = arith.constant 0 : i32
    %c0_i32_1 = arith.constant 0 : i32
    return %c0_i32, %c0_i32_0 : i32, i32
  }
  func.func @transform_7(%arg0: i32) -> (i32, i32) {
    %c0_i32 = arith.constant 0 : i32
    %c0_i32_0 = arith.constant 0 : i32
    %c0_i32_1 = arith.constant 0 : i32
    return %c0_i32, %c0_i32_0 : i32, i32
  }
  func.func @transform_8(%arg0: i32) -> (i32, i32) {
    %c0_i32 = arith.constant 0 : i32
    %c0_i32_0 = arith.constant 0 : i32
    %c0_i32_1 = arith.constant 0 : i32
    return %c0_i32, %c0_i32_0 : i32, i32
  }
  func.func @transform_9(%arg0: i32) -> (i32, i32) {
    %c0_i32 = arith.constant 0 : i32
    %c0_i32_0 = arith.constant 0 : i32
    return %arg0, %c0_i32 : i32, i32
  }
}

</mosaic_0001>

<llo_original>
// kernel: titanic_network_forward.1
$region0: #{titanic_network_forward.1}
  #allocation0 [shape = 'u32[]', space=smem, size = 0x4, offset = 0x4, fixed_abs, tag = 'smem constant byte address 0x4 - core index']
  #allocation1 [shape = 'u32[144,128]{1,0:T(1,128)}', space=vmem, size = 0x12000, scoped, tag = 'internal scratch']
  %s0 = inlined_call_operand.vmem [shape: bf16[16,32], index: 0, kind: input, shape index: {}]
  %s1 = inlined_call_operand.hbm [shape: bf16[32,512], index: 1, kind: input, shape index: {}]
  %s2 = inlined_call_operand.vmem [shape: f32[1,512], index: 2, kind: input, shape index: {}]
  %s3 = inlined_call_operand.hbm [shape: bf16[512,512], index: 3, kind: input, shape index: {}]
  %s4 = inlined_call_operand.vmem [shape: f32[1,512], index: 4, kind: input, shape index: {}]
  %s5 = inlined_call_operand.hbm [shape: bf16[512,512], index: 5, kind: input, shape index: {}]
  %s6 = inlined_call_operand.vmem [shape: f32[1,512], index: 6, kind: input, shape index: {}]
  %s7 = inlined_call_operand.hbm [shape: bf16[512,128], index: 7, kind: input, shape index: {}]
  %s8 = inlined_call_operand.vmem [shape: f32[1,128], index: 8, kind: input, shape index: {}]
  %s9 = inlined_call_operand.vmem [shape: f32[16,128], index: 9, kind: output, shape index: {}]
  %s10 = sld [smem:[#allocation0]]
  $region62: #{titanic_network_forward.1} parent=0
    _
  %s12 = ssub.s32 1, %s10
  %s13 = scalar_select 0, %s12, %s10
  $region1: #{titanic_network_forward.1} parent=0
    #allocation2 [shape = 'u8[32768]{0}', space=vmem, size = 0x8000, scoped, tag = 'input window, operand 1, single buffered']
    #allocation3 [shape = 's32[1]{0}', space=sflag, size = 0x4, scoped, tag = 'scoped memory for titanic_network_forward.1']
    #allocation4 [shape = 'u8[524288]{0}', space=vmem, size = 0x80000, scoped, tag = 'input window, operand 3, single buffered']
    #allocation5 [shape = 's32[1]{0}', space=sflag, size = 0x4, scoped, tag = 'scoped memory for titanic_network_forward.1']
    #allocation6 [shape = 'u8[524288]{0}', space=vmem, size = 0x80000, scoped, tag = 'input window, operand 5, single buffered']
    #allocation7 [shape = 'u8[131072]{0}', space=vmem, size = 0x20000, scoped, tag = 'input window, operand 7, single buffered']
    #allocation8 [shape = 's32[1]{0}', space=sflag, size = 0x4, scoped, tag = 'scoped memory for titanic_network_forward.1']
    %14 = vsyncpa [#allocation3], 0
    %15 = vsyncpa [#allocation5], 0
    %16 = vsyncpa [#allocation8], 0
    // Predicated region
    $region2: #{titanic_network_forward.1} parent=1 // pred_check
      _
    $region3: #{titanic_network_forward.1} parent=1 // pred_check_branch
      %18 = sbr.rel (0) target = $region5
    $region4: #{titanic_network_forward.1} parent=1 // pred_region
      _
    $region5: #{titanic_network_forward.1} parent=1 // pred_fallthru
      _
    // Predicated region
    $region6: #{titanic_network_forward.1} parent=1 // pred_check
      _
    $region7: #{titanic_network_forward.1} parent=1 // pred_check_branch
      %20 = sbr.rel (0) target = $region9
    $region8: #{titanic_network_forward.1} parent=1 // pred_region
      %s22 = ssub.s32 1024, 1024
      %23 = vsyncadd [#allocation3], %s22
      %s24 = sshll.u32 [#allocation2], 4
      %s25 = int_to_ptr.vmem [resolvable:$true] %s24
      %30 = dma.hbm_to_vmem [thread:$0]  %s1, 1024, %s25, [#allocation3], 256, 256, 16
    $region9: #{titanic_network_forward.1} parent=1 // pred_fallthru
      _
    // Predicated region
    $region10: #{titanic_network_forward.1} parent=1 // pred_check
      _
    $region11: #{titanic_network_forward.1} parent=1 // pred_check_branch
      %32 = sbr.rel (0) target = $region13
    $region12: #{titanic_network_forward.1} parent=1 // pred_region
      _
    $region13: #{titanic_network_forward.1} parent=1 // pred_fallthru
      _
    // Predicated region
    $region14: #{titanic_network_forward.1} parent=1 // pred_check
      _
    $region15: #{titanic_network_forward.1} parent=1 // pred_check_branch
      %34 = sbr.rel (0) target = $region17
    $region16: #{titanic_network_forward.1} parent=1 // pred_region
      %s36 = ssub.s32 16384, 16384
      %37 = vsyncadd [#allocation5], %s36
      %s38 = sshll.u32 [#allocation4], 4
      %s39 = int_to_ptr.vmem [resolvable:$true] %s38
      %44 = dma.hbm_to_vmem [thread:$0]  %s3, 16384, %s39, [#allocation5], 256, 256, 16
    $region17: #{titanic_network_forward.1} parent=1 // pred_fallthru
      _
    // Predicated region
    $region18: #{titanic_network_forward.1} parent=1 // pred_check
      _
    $region19: #{titanic_network_forward.1} parent=1 // pred_check_branch
      %46 = sbr.rel (0) target = $region21
    $region20: #{titanic_network_forward.1} parent=1 // pred_region
      _
    $region21: #{titanic_network_forward.1} parent=1 // pred_fallthru
      _
    // Predicated region
    $region22: #{titanic_network_forward.1} parent=1 // pred_check
      _
    $region23: #{titanic_network_forward.1} parent=1 // pred_check_branch
      %48 = sbr.rel (0) target = $region25
    $region24: #{titanic_network_forward.1} parent=1 // pred_region
      %s50 = ssub.s32 16384, 16384
      %51 = vsyncadd [#allocation5], %s50
      %s52 = sshll.u32 [#allocation6], 4
      %s53 = int_to_ptr.vmem [resolvable:$true] %s52
      %58 = dma.hbm_to_vmem [thread:$0]  %s5, 16384, %s53, [#allocation5], 256, 256, 16
    $region25: #{titanic_network_forward.1} parent=1 // pred_fallthru
      _
    // Predicated region
    $region26: #{titanic_network_forward.1} parent=1 // pred_check
      _
    $region27: #{titanic_network_forward.1} parent=1 // pred_check_branch
      %60 = sbr.rel (0) target = $region29
    $region28: #{titanic_network_forward.1} parent=1 // pred_region
      _
    $region29: #{titanic_network_forward.1} parent=1 // pred_fallthru
      _
    // Predicated region
    $region30: #{titanic_network_forward.1} parent=1 // pred_check
      _
    $region31: #{titanic_network_forward.1} parent=1 // pred_check_branch
      %62 = sbr.rel (0) target = $region33
    $region32: #{titanic_network_forward.1} parent=1 // pred_region
      %s64 = ssub.s32 4096, 4096
      %65 = vsyncadd [#allocation8], %s64
      %s66 = sshll.u32 [#allocation7], 4
      %s67 = int_to_ptr.vmem [resolvable:$true] %s66
      %72 = dma.hbm_to_vmem [thread:$0]  %s7, 4096, %s67, [#allocation8], 64, 64, 4
    $region33: #{titanic_network_forward.1} parent=1 // pred_fallthru
      _
    // Predicated region
    $region34: #{titanic_network_forward.1} parent=1 // pred_check
      _
    $region35: #{titanic_network_forward.1} parent=1 // pred_check_branch
      %74 = sbr.rel (0) target = $region37
    $region36: #{titanic_network_forward.1} parent=1 // pred_region
      _
    $region37: #{titanic_network_forward.1} parent=1 // pred_fallthru
      _
    // Predicated region
    $region38: #{titanic_network_forward.1} parent=1 // pred_check
      _
    $region39: #{titanic_network_forward.1} parent=1 // pred_check_branch
      %76 = sbr.rel (0) target = $region41
    $region40: #{titanic_network_forward.1} parent=1 // pred_region
      %77 = dma.done [#allocation3], 1024
    $region41: #{titanic_network_forward.1} parent=1 // pred_fallthru
      _
    // Predicated region
    $region42: #{titanic_network_forward.1} parent=1 // pred_check
      _
    $region43: #{titanic_network_forward.1} parent=1 // pred_check_branch
      %79 = sbr.rel (0) target = $region45
    $region44: #{titanic_network_forward.1} parent=1 // pred_region
      %80 = dma.done [#allocation5], 16384
    $region45: #{titanic_network_forward.1} parent=1 // pred_fallthru
      _
    // Predicated region
    $region46: #{titanic_network_forward.1} parent=1 // pred_check
      _
    $region47: #{titanic_network_forward.1} parent=1 // pred_check_branch
      %82 = sbr.rel (0) target = $region49
    $region48: #{titanic_network_forward.1} parent=1 // pred_region
      %83 = dma.done [#allocation5], 16384
    $region49: #{titanic_network_forward.1} parent=1 // pred_fallthru
      _
    // Predicated region
    $region50: #{titanic_network_forward.1} parent=1 // pred_check
      _
    $region51: #{titanic_network_forward.1} parent=1 // pred_check_branch
      %85 = sbr.rel (0) target = $region53
    $region52: #{titanic_network_forward.1} parent=1 // pred_region
      %86 = dma.done [#allocation8], 4096
    $region53: #{titanic_network_forward.1} parent=1 // pred_fallthru
      _
    %v88 = vld [vmem:[%s0] sm:$0xf]
    %v89 = vld [vmem:[%s0 + $0x4] sm:$0xf]
    %v90 = vld [vmem:[#allocation2] sm:$0xff]
    %v91 = vld [vmem:[#allocation2 + $0x8] sm:$0xff]
    %v92 = vld [vmem:[#allocation2 + $0x10] sm:$0xff]
    %v93 = vld [vmem:[#allocation2 + $0x18] sm:$0xff]
    %v94 = vld [vmem:[#allocation2 + $0x20] sm:$0xff]
    %v95 = vld [vmem:[#allocation2 + $0x28] sm:$0xff]
    %v96 = vld [vmem:[#allocation2 + $0x30] sm:$0xff]
    %v97 = vld [vmem:[#allocation2 + $0x38] sm:$0xff]
    %v98 = vld [vmem:[%s2] sm:$0xf]
    %v100 = vlaneseq
    %v101 = vshrl.u32 %v100, 7
    %v102 = vsub.s32 0, %v101
    %v103 = vrot.slane %v98, %v102
    %v104 = vlaneseq
    %v105 = vshrl.u32 %v104, 7
    %v106 = vsub.s32 1, %v105
    %v107 = vrot.slane %v98, %v106
    %v108 = vlaneseq
    %v109 = vshrl.u32 %v108, 7
    %v110 = vsub.s32 2, %v109
    %v111 = vrot.slane %v98, %v110
    %v112 = vlaneseq
    %v113 = vshrl.u32 %v112, 7
    %v114 = vsub.s32 3, %v113
    %v115 = vrot.slane %v98, %v114
    %v122 = vunpack.c.l.b16 %v88
    %v123 = vunpack.c.l.b16 %v89
    %v124 = vpack.c.b16 %v123, %v122
    %v133 = vunpack.c.l.b16 %v90
    %v134 = vunpack.c.h.b16 %v90
    %v135 = vunpack.c.l.b16 %v91
    %v136 = vunpack.c.h.b16 %v91
    %v137 = vunpack.c.l.b16 %v92
    %v138 = vunpack.c.h.b16 %v92
    %v139 = vunpack.c.l.b16 %v93
    %v140 = vunpack.c.h.b16 %v93
    %v141 = vunpack.c.l.b16 %v94
    %v142 = vunpack.c.h.b16 %v94
    %v143 = vunpack.c.l.b16 %v95
    %v144 = vunpack.c.h.b16 %v95
    %v145 = vunpack.c.l.b16 %v96
    %v146 = vunpack.c.h.b16 %v96
    %v147 = vunpack.c.l.b16 %v97
    %v148 = vunpack.c.h.b16 %v97
    %v149 = vpack.c.b16 %v137, %v133
    %v150 = vpack.c.b16 %v138, %v134
    %v151 = vpack.c.b16 %v139, %v135
    %v152 = vpack.c.b16 %v140, %v136
    %v153 = vpack.c.b16 %v145, %v141
    %v154 = vpack.c.b16 %v146, %v142
    %v155 = vpack.c.b16 %v147, %v143
    %v156 = vpack.c.b16 %v148, %v144
    %vm165 = vcmask 261120
    %v167 = vsel %vm165, %v124, 0
    %169 = vmatprep.subr.bf16.mxu0 0
    %170 = vmatpush1.bf16.msra.mxu0 0
    %171 = vmatprep.subr.bf16.mxu0 0
    %172 = vmatpush1.bf16.msra.mxu0 0
    %173 = vmatprep.subr.bf16.mxu0 0
    %174 = vmatpush1.bf16.msra.mxu0 0
    %175 = vmatprep.subr.bf16.mxu0 0
    %176 = vmatpush1.bf16.msra.mxu0 0
    %177 = vmatprep.subr.bf16.mxu0 0
    %178 = vmatpush1.bf16.msra.mxu0 0
    %179 = vmatprep.subr.bf16.mxu0 0
    %180 = vmatpush1.bf16.msra.mxu0 0
    %181 = vmatprep.subr.bf16.mxu0 %v154
    %182 = vmatpush1.bf16.msra.mxu0 %v153
    %183 = vmatprep.subr.bf16.mxu0 %v150
    %184 = vmatpush1.bf16.msra.mxu0 %v149
    %185 = vmatprep.subr.bf16.mxu0 0
    %186 = vmatpush2.bf16.msra.mxu0 0
    %187 = vmatprep.subr.bf16.mxu0 0
    %188 = vmatpush2.bf16.msra.mxu0 0
    %189 = vmatprep.subr.bf16.mxu0 0
    %190 = vmatpush2.bf16.msra.mxu0 0
    %191 = vmatprep.subr.bf16.mxu0 0
    %192 = vmatpush2.bf16.msra.mxu0 0
    %193 = vmatprep.subr.bf16.mxu0 0
    %194 = vmatpush2.bf16.msra.mxu0 0
    %195 = vmatprep.subr.bf16.mxu0 0
    %196 = vmatpush2.bf16.msra.mxu0 0
    %197 = vmatprep.subr.bf16.mxu0 0
    %198 = vmatpush2.bf16.msra.mxu0 0
    %199 = vmatprep.subr.bf16.mxu0 0
    %200 = vmatpush2.bf16.msra.mxu0 0
    %201 = vmatprep.mubr.bf16.mxu0 0
    %202 = vmatmul.mubr.bf16.gmra.mxu0 %v167
    %v203 = vpop.f32.mrf.mxu0
    %v204 = vadd.f32 %v103, %v203
    %v205 = vpop.f32.mrf.mxu0
    %v206 = vadd.f32 %v107, %v205
    %v207 = vpop.f32.mrf.mxu0
    %v208 = vadd.f32 %v103, %v207
    %v209 = vpop.f32.mrf.mxu0
    %v210 = vadd.f32 %v107, %v209
    %211 = vdwg.mxu0
    %212 = vmatprep.subr.bf16.mxu0 0
    %213 = vmatpush1.bf16.msra.mxu0 0
    %214 = vmatprep.subr.bf16.mxu0 0
    %215 = vmatpush1.bf16.msra.mxu0 0
    %216 = vmatprep.subr.bf16.mxu0 0
    %217 = vmatpush1.bf16.msra.mxu0 0
    %218 = vmatprep.subr.bf16.mxu0 0
    %219 = vmatpush1.bf16.msra.mxu0 0
    %220 = vmatprep.subr.bf16.mxu0 0
    %221 = vmatpush1.bf16.msra.mxu0 0
    %222 = vmatprep.subr.bf16.mxu0 0
    %223 = vmatpush1.bf16.msra.mxu0 0
    %224 = vmatprep.subr.bf16.mxu0 %v156
    %225 = vmatpush1.bf16.msra.mxu0 %v155
    %226 = vmatprep.subr.bf16.mxu0 %v152
    %227 = vmatpush1.bf16.msra.mxu0 %v151
    %228 = vmatprep.subr.bf16.mxu0 0
    %229 = vmatpush2.bf16.msra.mxu0 0
    %230 = vmatprep.subr.bf16.mxu0 0
    %231 = vmatpush2.bf16.msra.mxu0 0
    %232 = vmatprep.subr.bf16.mxu0 0
    %233 = vmatpush2.bf16.msra.mxu0 0
    %234 = vmatprep.subr.bf16.mxu0 0
    %235 = vmatpush2.bf16.msra.mxu0 0
    %236 = vmatprep.subr.bf16.mxu0 0
    %237 = vmatpush2.bf16.msra.mxu0 0
    %238 = vmatprep.subr.bf16.mxu0 0
    %239 = vmatpush2.bf16.msra.mxu0 0
    %240 = vmatprep.subr.bf16.mxu0 0
    %241 = vmatpush2.bf16.msra.mxu0 0
    %242 = vmatprep.subr.bf16.mxu0 0
    %243 = vmatpush2.bf16.msra.mxu0 0
    %244 = vmatprep.mubr.bf16.mxu0 0
    %245 = vmatmul.mubr.bf16.gmra.mxu0 %v167
    %v246 = vpop.f32.mrf.mxu0
    %v247 = vadd.f32 %v111, %v246
    %v248 = vpop.f32.mrf.mxu0
    %v249 = vadd.f32 %v115, %v248
    %v250 = vpop.f32.mrf.mxu0
    %v251 = vadd.f32 %v111, %v250
    %v252 = vpop.f32.mrf.mxu0
    %v253 = vadd.f32 %v115, %v252
    %254 = vdwg.mxu0
    %v255 = vmax.f32 %v204, 0.0
    %v256 = vmax.f32 %v206, 0.0
    %v257 = vmax.f32 %v247, 0.0
    %v258 = vmax.f32 %v249, 0.0
    %v259 = vmax.f32 %v208, 0.0
    %v260 = vmax.f32 %v210, 0.0
    %v261 = vmax.f32 %v251, 0.0
    %v262 = vmax.f32 %v253, 0.0
    %v263 = vpack.c.bf16 %v259, %v255
    %v264 = vpack.c.bf16 %v260, %v256
    %v265 = vpack.c.bf16 %v261, %v257
    %v266 = vpack.c.bf16 %v262, %v258
    %v267 = vld [vmem:[#allocation4] sm:$0xff]
    %v268 = vld [vmem:[#allocation4 + $0x8] sm:$0xff]
    %v269 = vld [vmem:[#allocation4 + $0x10] sm:$0xff]
    %v270 = vld [vmem:[#allocation4 + $0x18] sm:$0xff]
    %v271 = vld [vmem:[#allocation4 + $0x20] sm:$0xff]
    %v272 = vld [vmem:[#allocation4 + $0x28] sm:$0xff]
    %v273 = vld [vmem:[#allocation4 + $0x30] sm:$0xff]
    %v274 = vld [vmem:[#allocation4 + $0x38] sm:$0xff]
    %v275 = vld [vmem:[#allocation4 + $0x40] sm:$0xff]
    %v276 = vld [vmem:[#allocation4 + $0x48] sm:$0xff]
    %v277 = vld [vmem:[#allocation4 + $0x50] sm:$0xff]
    %v278 = vld [vmem:[#allocation4 + $0x58] sm:$0xff]
    %v279 = vld [vmem:[#allocation4 + $0x60] sm:$0xff]
    %v280 = vld [vmem:[#allocation4 + $0x68] sm:$0xff]
    %v281 = vld [vmem:[#allocation4 + $0x70] sm:$0xff]
    %v282 = vld [vmem:[#allocation4 + $0x78] sm:$0xff]
    %v283 = vld [vmem:[#allocation4 + $0x80] sm:$0xff]
    %v284 = vld [vmem:[#allocation4 + $0x88] sm:$0xff]
    %v285 = vld [vmem:[#allocation4 + $0x90] sm:$0xff]
    %v286 = vld [vmem:[#allocation4 + $0x98] sm:$0xff]
    %v287 = vld [vmem:[#allocation4 + $0xa0] sm:$0xff]
    %v288 = vld [vmem:[#allocation4 + $0xa8] sm:$0xff]
    %v289 = vld [vmem:[#allocation4 + $0xb0] sm:$0xff]
    %v290 = vld [vmem:[#allocation4 + $0xb8] sm:$0xff]
    %v291 = vld [vmem:[#allocation4 + $0xc0] sm:$0xff]
    %v292 = vld [vmem:[#allocation4 + $0xc8] sm:$0xff]
    %v293 = vld [vmem:[#allocation4 + $0xd0] sm:$0xff]
    %v294 = vld [vmem:[#allocation4 + $0xd8] sm:$0xff]
    %v295 = vld [vmem:[#allocation4 + $0xe0] sm:$0xff]
    %v296 = vld [vmem:[#allocation4 + $0xe8] sm:$0xff]
    %v297 = vld [vmem:[#allocation4 + $0xf0] sm:$0xff]
    %v298 = vld [vmem:[#allocation4 + $0xf8] sm:$0xff]
    %v299 = vld [vmem:[#allocation4 + $0x100] sm:$0xff]
    %v300 = vld [vmem:[#allocation4 + $0x108] sm:$0xff]
    %v301 = vld [vmem:[#allocation4 + $0x110] sm:$0xff]
    %v302 = vld [vmem:[#allocation4 + $0x118] sm:$0xff]
    %v303 = vld [vmem:[#allocation4 + $0x120] sm:$0xff]
    %v304 = vld [vmem:[#allocation4 + $0x128] sm:$0xff]
    %v305 = vld [vmem:[#allocation4 + $0x130] sm:$0xff]
    %v306 = vld [vmem:[#allocation4 + $0x138] sm:$0xff]
    %v307 = vld [vmem:[#allocation4 + $0x140] sm:$0xff]
    %v308 = vld [vmem:[#allocation4 + $0x148] sm:$0xff]
    %v309 = vld [vmem:[#allocation4 + $0x150] sm:$0xff]
    %v310 = vld [vmem:[#allocation4 + $0x158] sm:$0xff]
    %v311 = vld [vmem:[#allocation4 + $0x160] sm:$0xff]
    %v312 = vld [vmem:[#allocation4 + $0x168] sm:$0xff]
    %v313 = vld [vmem:[#allocation4 + $0x170] sm:$0xff]
    %v314 = vld [vmem:[#allocation4 + $0x178] sm:$0xff]
    %v315 = vld [vmem:[#allocation4 + $0x180] sm:$0xff]
    %v316 = vld [vmem:[#allocation4 + $0x188] sm:$0xff]
    %v317 = vld [vmem:[#allocation4 + $0x190] sm:$0xff]
    %v318 = vld [vmem:[#allocation4 + $0x198] sm:$0xff]
    %v319 = vld [vmem:[#allocation4 + $0x1a0] sm:$0xff]
    %v320 = vld [vmem:[#allocation4 + $0x1a8] sm:$0xff]
    %v321 = vld [vmem:[#allocation4 + $0x1b0] sm:$0xff]
    %v322 = vld [vmem:[#allocation4 + $0x1b8] sm:$0xff]
    %v323 = vld [vmem:[#allocation4 + $0x1c0] sm:$0xff]
    %v324 = vld [vmem:[#allocation4 + $0x1c8] sm:$0xff]
    %v325 = vld [vmem:[#allocation4 + $0x1d0] sm:$0xff]
    %v326 = vld [vmem:[#allocation4 + $0x1d8] sm:$0xff]
    %v327 = vld [vmem:[#allocation4 + $0x1e0] sm:$0xff]
    %v328 = vld [vmem:[#allocation4 + $0x1e8] sm:$0xff]
    %v329 = vld [vmem:[#allocation4 + $0x1f0] sm:$0xff]
    %v330 = vld [vmem:[#allocation4 + $0x1f8] sm:$0xff]
    %v331 = vld [vmem:[#allocation4 + $0x200] sm:$0xff]
    %v332 = vld [vmem:[#allocation4 + $0x208] sm:$0xff]
    %v333 = vld [vmem:[#allocation4 + $0x210] sm:$0xff]
    %v334 = vld [vmem:[#allocation4 + $0x218] sm:$0xff]
    %v335 = vld [vmem:[#allocation4 + $0x220] sm:$0xff]
    %v336 = vld [vmem:[#allocation4 + $0x228] sm:$0xff]
    %v337 = vld [vmem:[#allocation4 + $0x230] sm:$0xff]
    %v338 = vld [vmem:[#allocation4 + $0x238] sm:$0xff]
    %v339 = vld [vmem:[#allocation4 + $0x240] sm:$0xff]
    %v340 = vld [vmem:[#allocation4 + $0x248] sm:$0xff]
    %v341 = vld [vmem:[#allocation4 + $0x250] sm:$0xff]
    %v342 = vld [vmem:[#allocation4 + $0x258] sm:$0xff]
    %v343 = vld [vmem:[#allocation4 + $0x260] sm:$0xff]
    %v344 = vld [vmem:[#allocation4 + $0x268] sm:$0xff]
    %v345 = vld [vmem:[#allocation4 + $0x270] sm:$0xff]
    %v346 = vld [vmem:[#allocation4 + $0x278] sm:$0xff]
    %v347 = vld [vmem:[#allocation4 + $0x280] sm:$0xff]
    %v348 = vld [vmem:[#allocation4 + $0x288] sm:$0xff]
    %v349 = vld [vmem:[#allocation4 + $0x290] sm:$0xff]
    %v350 = vld [vmem:[#allocation4 + $0x298] sm:$0xff]
    %v351 = vld [vmem:[#allocation4 + $0x2a0] sm:$0xff]
    %v352 = vld [vmem:[#allocation4 + $0x2a8] sm:$0xff]
    %v353 = vld [vmem:[#allocation4 + $0x2b0] sm:$0xff]
    %v354 = vld [vmem:[#allocation4 + $0x2b8] sm:$0xff]
    %v355 = vld [vmem:[#allocation4 + $0x2c0] sm:$0xff]
    %v356 = vld [vmem:[#allocation4 + $0x2c8] sm:$0xff]
    %v357 = vld [vmem:[#allocation4 + $0x2d0] sm:$0xff]
    %v358 = vld [vmem:[#allocation4 + $0x2d8] sm:$0xff]
    %v359 = vld [vmem:[#allocation4 + $0x2e0] sm:$0xff]
    %v360 = vld [vmem:[#allocation4 + $0x2e8] sm:$0xff]
    %v361 = vld [vmem:[#allocation4 + $0x2f0] sm:$0xff]
    %v362 = vld [vmem:[#allocation4 + $0x2f8] sm:$0xff]
    %v363 = vld [vmem:[#allocation4 + $0x300] sm:$0xff]
    %v364 = vld [vmem:[#allocation4 + $0x308] sm:$0xff]
    %v365 = vld [vmem:[#allocation4 + $0x310] sm:$0xff]
    %v366 = vld [vmem:[#allocation4 + $0x318] sm:$0xff]
    %v367 = vld [vmem:[#allocation4 + $0x320] sm:$0xff]
    %v368 = vld [vmem:[#allocation4 + $0x328] sm:$0xff]
    %v369 = vld [vmem:[#allocation4 + $0x330] sm:$0xff]
    %v370 = vld [vmem:[#allocation4 + $0x338] sm:$0xff]
    %v371 = vld [vmem:[#allocation4 + $0x340] sm:$0xff]
    %v372 = vld [vmem:[#allocation4 + $0x348] sm:$0xff]
    %v373 = vld [vmem:[#allocation4 + $0x350] sm:$0xff]
    %v374 = vld [vmem:[#allocation4 + $0x358] sm:$0xff]
    %v375 = vld [vmem:[#allocation4 + $0x360] sm:$0xff]
    %v376 = vld [vmem:[#allocation4 + $0x368] sm:$0xff]
    %v377 = vld [vmem:[#allocation4 + $0x370] sm:$0xff]
    %v378 = vld [vmem:[#allocation4 + $0x378] sm:$0xff]
    %v379 = vld [vmem:[#allocation4 + $0x380] sm:$0xff]
    %v380 = vld [vmem:[#allocation4 + $0x388] sm:$0xff]
    %v381 = vld [vmem:[#allocation4 + $0x390] sm:$0xff]
    %v382 = vld [vmem:[#allocation4 + $0x398] sm:$0xff]
    %v383 = vld [vmem:[#allocation4 + $0x3a0] sm:$0xff]
    %v384 = vld [vmem:[#allocation4 + $0x3a8] sm:$0xff]
    %v385 = vld [vmem:[#allocation4 + $0x3b0] sm:$0xff]
    %v386 = vld [vmem:[#allocation4 + $0x3b8] sm:$0xff]
    %v387 = vld [vmem:[#allocation4 + $0x3c0] sm:$0xff]
    %v388 = vld [vmem:[#allocation4 + $0x3c8] sm:$0xff]
    %v389 = vld [vmem:[#allocation4 + $0x3d0] sm:$0xff]
    %v390 = vld [vmem:[#allocation4 + $0x3d8] sm:$0xff]
    %v391 = vld [vmem:[#allocation4 + $0x3e0] sm:$0xff]
    %v392 = vld [vmem:[#allocation4 + $0x3e8] sm:$0xff]
    %v393 = vld [vmem:[#allocation4 + $0x3f0] sm:$0xff]
    %v394 = vld [vmem:[#allocation4 + $0x3f8] sm:$0xff]
    %v395 = vld [vmem:[%s4] sm:$0xf]
    %v397 = vlaneseq
    %v398 = vshrl.u32 %v397, 7
    %v399 = vsub.s32 0, %v398
    %v400 = vrot.slane %v395, %v399
    %v401 = vlaneseq
    %v402 = vshrl.u32 %v401, 7
    %v403 = vsub.s32 1, %v402
    %v404 = vrot.slane %v395, %v403
    %v405 = vlaneseq
    %v406 = vshrl.u32 %v405, 7
    %v407 = vsub.s32 2, %v406
    %v408 = vrot.slane %v395, %v407
    %v409 = vlaneseq
    %v410 = vshrl.u32 %v409, 7
    %v411 = vsub.s32 3, %v410
    %v412 = vrot.slane %v395, %v411
    %v545 = vunpack.c.l.b16 %v267
    %v546 = vunpack.c.h.b16 %v267
    %v547 = vunpack.c.l.b16 %v268
    %v548 = vunpack.c.h.b16 %v268
    %v549 = vunpack.c.l.b16 %v269
    %v550 = vunpack.c.h.b16 %v269
    %v551 = vunpack.c.l.b16 %v270
    %v552 = vunpack.c.h.b16 %v270
    %v553 = vunpack.c.l.b16 %v271
    %v554 = vunpack.c.h.b16 %v271
    %v555 = vunpack.c.l.b16 %v272
    %v556 = vunpack.c.h.b16 %v272
    %v557 = vunpack.c.l.b16 %v273
    %v558 = vunpack.c.h.b16 %v273
    %v559 = vunpack.c.l.b16 %v274
    %v560 = vunpack.c.h.b16 %v274
    %v561 = vunpack.c.l.b16 %v275
    %v562 = vunpack.c.h.b16 %v275
    %v563 = vunpack.c.l.b16 %v276
    %v564 = vunpack.c.h.b16 %v276
    %v565 = vunpack.c.l.b16 %v277
    %v566 = vunpack.c.h.b16 %v277
    %v567 = vunpack.c.l.b16 %v278
    %v568 = vunpack.c.h.b16 %v278
    %v569 = vunpack.c.l.b16 %v279
    %v570 = vunpack.c.h.b16 %v279
    %v571 = vunpack.c.l.b16 %v280
    %v572 = vunpack.c.h.b16 %v280
    %v573 = vunpack.c.l.b16 %v281
    %v574 = vunpack.c.h.b16 %v281
    %v575 = vunpack.c.l.b16 %v282
    %v576 = vunpack.c.h.b16 %v282
    %v577 = vunpack.c.l.b16 %v283
    %v578 = vunpack.c.h.b16 %v283
    %v579 = vunpack.c.l.b16 %v284
    %v580 = vunpack.c.h.b16 %v284
    %v581 = vunpack.c.l.b16 %v285
    %v582 = vunpack.c.h.b16 %v285
    %v583 = vunpack.c.l.b16 %v286
    %v584 = vunpack.c.h.b16 %v286
    %v585 = vunpack.c.l.b16 %v287
    %v586 = vunpack.c.h.b16 %v287
    %v587 = vunpack.c.l.b16 %v288
    %v588 = vunpack.c.h.b16 %v288
    %v589 = vunpack.c.l.b16 %v289
    %v590 = vunpack.c.h.b16 %v289
    %v591 = vunpack.c.l.b16 %v290
    %v592 = vunpack.c.h.b16 %v290
    %v593 = vunpack.c.l.b16 %v291
    %v594 = vunpack.c.h.b16 %v291
    %v595 = vunpack.c.l.b16 %v292
    %v596 = vunpack.c.h.b16 %v292
    %v597 = vunpack.c.l.b16 %v293
    %v598 = vunpack.c.h.b16 %v293
    %v599 = vunpack.c.l.b16 %v294
    %v600 = vunpack.c.h.b16 %v294
    %v601 = vunpack.c.l.b16 %v295
    %v602 = vunpack.c.h.b16 %v295
    %v603 = vunpack.c.l.b16 %v296
    %v604 = vunpack.c.h.b16 %v296
    %v605 = vunpack.c.l.b16 %v297
    %v606 = vunpack.c.h.b16 %v297
    %v607 = vunpack.c.l.b16 %v298
    %v608 = vunpack.c.h.b16 %v298
    %v609 = vunpack.c.l.b16 %v299
    %v610 = vunpack.c.h.b16 %v299
    %v611 = vunpack.c.l.b16 %v300
    %v612 = vunpack.c.h.b16 %v300
    %v613 = vunpack.c.l.b16 %v301
    %v614 = vunpack.c.h.b16 %v301
    %v615 = vunpack.c.l.b16 %v302
    %v616 = vunpack.c.h.b16 %v302
    %v617 = vunpack.c.l.b16 %v303
    %v618 = vunpack.c.h.b16 %v303
    %v619 = vunpack.c.l.b16 %v304
    %v620 = vunpack.c.h.b16 %v304
    %v621 = vunpack.c.l.b16 %v305
    %v622 = vunpack.c.h.b16 %v305
    %v623 = vunpack.c.l.b16 %v306
    %v624 = vunpack.c.h.b16 %v306
    %v625 = vunpack.c.l.b16 %v307
    %v626 = vunpack.c.h.b16 %v307
    %v627 = vunpack.c.l.b16 %v308
    %v628 = vunpack.c.h.b16 %v308
    %v629 = vunpack.c.l.b16 %v309
    %v630 = vunpack.c.h.b16 %v309
    %v631 = vunpack.c.l.b16 %v310
    %v632 = vunpack.c.h.b16 %v310
    %v633 = vunpack.c.l.b16 %v311
    %v634 = vunpack.c.h.b16 %v311
    %v635 = vunpack.c.l.b16 %v312
    %v636 = vunpack.c.h.b16 %v312
    %v637 = vunpack.c.l.b16 %v313
    %v638 = vunpack.c.h.b16 %v313
    %v639 = vunpack.c.l.b16 %v314
    %v640 = vunpack.c.h.b16 %v314
    %v641 = vunpack.c.l.b16 %v315
    %v642 = vunpack.c.h.b16 %v315
    %v643 = vunpack.c.l.b16 %v316
    %v644 = vunpack.c.h.b16 %v316
    %v645 = vunpack.c.l.b16 %v317
    %v646 = vunpack.c.h.b16 %v317
    %v647 = vunpack.c.l.b16 %v318
    %v648 = vunpack.c.h.b16 %v318
    %v649 = vunpack.c.l.b16 %v319
    %v650 = vunpack.c.h.b16 %v319
    %v651 = vunpack.c.l.b16 %v320
    %v652 = vunpack.c.h.b16 %v320
    %v653 = vunpack.c.l.b16 %v321
    %v654 = vunpack.c.h.b16 %v321
    %v655 = vunpack.c.l.b16 %v322
    %v656 = vunpack.c.h.b16 %v322
    %v657 = vunpack.c.l.b16 %v323
    %v658 = vunpack.c.h.b16 %v323
    %v659 = vunpack.c.l.b16 %v324
    %v660 = vunpack.c.h.b16 %v324
    %v661 = vunpack.c.l.b16 %v325
    %v662 = vunpack.c.h.b16 %v325
    %v663 = vunpack.c.l.b16 %v326
    %v664 = vunpack.c.h.b16 %v326
    %v665 = vunpack.c.l.b16 %v327
    %v666 = vunpack.c.h.b16 %v327
    %v667 = vunpack.c.l.b16 %v328
    %v668 = vunpack.c.h.b16 %v328
    %v669 = vunpack.c.l.b16 %v329
    %v670 = vunpack.c.h.b16 %v329
    %v671 = vunpack.c.l.b16 %v330
    %v672 = vunpack.c.h.b16 %v330
    %v673 = vunpack.c.l.b16 %v331
    %v674 = vunpack.c.h.b16 %v331
    %v675 = vunpack.c.l.b16 %v332
    %v676 = vunpack.c.h.b16 %v332
    %v677 = vunpack.c.l.b16 %v333
    %v678 = vunpack.c.h.b16 %v333
    %v679 = vunpack.c.l.b16 %v334
    %v680 = vunpack.c.h.b16 %v334
    %v681 = vunpack.c.l.b16 %v335
    %v682 = vunpack.c.h.b16 %v335
    %v683 = vunpack.c.l.b16 %v336
    %v684 = vunpack.c.h.b16 %v336
    %v685 = vunpack.c.l.b16 %v337
    %v686 = vunpack.c.h.b16 %v337
    %v687 = vunpack.c.l.b16 %v338
    %v688 = vunpack.c.h.b16 %v338
    %v689 = vunpack.c.l.b16 %v339
    %v690 = vunpack.c.h.b16 %v339
    %v691 = vunpack.c.l.b16 %v340
    %v692 = vunpack.c.h.b16 %v340
    %v693 = vunpack.c.l.b16 %v341
    %v694 = vunpack.c.h.b16 %v341
    %v695 = vunpack.c.l.b16 %v342
    %v696 = vunpack.c.h.b16 %v342
    %v697 = vunpack.c.l.b16 %v343
    %v698 = vunpack.c.h.b16 %v343
    %v699 = vunpack.c.l.b16 %v344
    %v700 = vunpack.c.h.b16 %v344
    %v701 = vunpack.c.l.b16 %v345
    %v702 = vunpack.c.h.b16 %v345
    %v703 = vunpack.c.l.b16 %v346
    %v704 = vunpack.c.h.b16 %v346
    %v705 = vunpack.c.l.b16 %v347
    %v706 = vunpack.c.h.b16 %v347
    %v707 = vunpack.c.l.b16 %v348
    %v708 = vunpack.c.h.b16 %v348
    %v709 = vunpack.c.l.b16 %v349
    %v710 = vunpack.c.h.b16 %v349
    %v711 = vunpack.c.l.b16 %v350
    %v712 = vunpack.c.h.b16 %v350
    %v713 = vunpack.c.l.b16 %v351
    %v714 = vunpack.c.h.b16 %v351
    %v715 = vunpack.c.l.b16 %v352
    %v716 = vunpack.c.h.b16 %v352
    %v717 = vunpack.c.l.b16 %v353
    %v718 = vunpack.c.h.b16 %v353
    %v719 = vunpack.c.l.b16 %v354
    %v720 = vunpack.c.h.b16 %v354
    %v721 = vunpack.c.l.b16 %v355
    %v722 = vunpack.c.h.b16 %v355
    %v723 = vunpack.c.l.b16 %v356
    %v724 = vunpack.c.h.b16 %v356
    %v725 = vunpack.c.l.b16 %v357
    %v726 = vunpack.c.h.b16 %v357
    %v727 = vunpack.c.l.b16 %v358
    %v728 = vunpack.c.h.b16 %v358
    %v729 = vunpack.c.l.b16 %v359
    %v730 = vunpack.c.h.b16 %v359
    %v731 = vunpack.c.l.b16 %v360
    %v732 = vunpack.c.h.b16 %v360
    %v733 = vunpack.c.l.b16 %v361
    %v734 = vunpack.c.h.b16 %v361
    %v735 = vunpack.c.l.b16 %v362
    %v736 = vunpack.c.h.b16 %v362
    %v737 = vunpack.c.l.b16 %v363
    %v738 = vunpack.c.h.b16 %v363
    %v739 = vunpack.c.l.b16 %v364
    %v740 = vunpack.c.h.b16 %v364
    %v741 = vunpack.c.l.b16 %v365
    %v742 = vunpack.c.h.b16 %v365
    %v743 = vunpack.c.l.b16 %v366
    %v744 = vunpack.c.h.b16 %v366
    %v745 = vunpack.c.l.b16 %v367
    %v746 = vunpack.c.h.b16 %v367
    %v747 = vunpack.c.l.b16 %v368
    %v748 = vunpack.c.h.b16 %v368
    %v749 = vunpack.c.l.b16 %v369
    %v750 = vunpack.c.h.b16 %v369
    %v751 = vunpack.c.l.b16 %v370
    %v752 = vunpack.c.h.b16 %v370
    %v753 = vunpack.c.l.b16 %v371
    %v754 = vunpack.c.h.b16 %v371
    %v755 = vunpack.c.l.b16 %v372
    %v756 = vunpack.c.h.b16 %v372
    %v757 = vunpack.c.l.b16 %v373
    %v758 = vunpack.c.h.b16 %v373
    %v759 = vunpack.c.l.b16 %v374
    %v760 = vunpack.c.h.b16 %v374
    %v761 = vunpack.c.l.b16 %v375
    %v762 = vunpack.c.h.b16 %v375
    %v763 = vunpack.c.l.b16 %v376
    %v764 = vunpack.c.h.b16 %v376
    %v765 = vunpack.c.l.b16 %v377
    %v766 = vunpack.c.h.b16 %v377
    %v767 = vunpack.c.l.b16 %v378
    %v768 = vunpack.c.h.b16 %v378
    %v769 = vunpack.c.l.b16 %v379
    %v770 = vunpack.c.h.b16 %v379
    %v771 = vunpack.c.l.b16 %v380
    %v772 = vunpack.c.h.b16 %v380
    %v773 = vunpack.c.l.b16 %v381
    %v774 = vunpack.c.h.b16 %v381
    %v775 = vunpack.c.l.b16 %v382
    %v776 = vunpack.c.h.b16 %v382
    %v777 = vunpack.c.l.b16 %v383
    %v778 = vunpack.c.h.b16 %v383
    %v779 = vunpack.c.l.b16 %v384
    %v780 = vunpack.c.h.b16 %v384
    %v781 = vunpack.c.l.b16 %v385
    %v782 = vunpack.c.h.b16 %v385
    %v783 = vunpack.c.l.b16 %v386
    %v784 = vunpack.c.h.b16 %v386
    %v785 = vunpack.c.l.b16 %v387
    %v786 = vunpack.c.h.b16 %v387
    %v787 = vunpack.c.l.b16 %v388
    %v788 = vunpack.c.h.b16 %v388
    %v789 = vunpack.c.l.b16 %v389
    %v790 = vunpack.c.h.b16 %v389
    %v791 = vunpack.c.l.b16 %v390
    %v792 = vunpack.c.h.b16 %v390
    %v793 = vunpack.c.l.b16 %v391
    %v794 = vunpack.c.h.b16 %v391
    %v795 = vunpack.c.l.b16 %v392
    %v796 = vunpack.c.h.b16 %v392
    %v797 = vunpack.c.l.b16 %v393
    %v798 = vunpack.c.h.b16 %v393
    %v799 = vunpack.c.l.b16 %v394
    %v800 = vunpack.c.h.b16 %v394
    %v801 = vpack.c.b16 %v549, %v545
    %v802 = vpack.c.b16 %v550, %v546
    %v803 = vpack.c.b16 %v551, %v547
    %v804 = vpack.c.b16 %v552, %v548
    %v805 = vpack.c.b16 %v557, %v553
    %v806 = vpack.c.b16 %v558, %v554
    %v807 = vpack.c.b16 %v559, %v555
    %v808 = vpack.c.b16 %v560, %v556
    %v809 = vpack.c.b16 %v565, %v561
    %v810 = vpack.c.b16 %v566, %v562
    %v811 = vpack.c.b16 %v567, %v563
    %v812 = vpack.c.b16 %v568, %v564
    %v813 = vpack.c.b16 %v573, %v569
    %v814 = vpack.c.b16 %v574, %v570
    %v815 = vpack.c.b16 %v575, %v571
    %v816 = vpack.c.b16 %v576, %v572
    %v817 = vpack.c.b16 %v581, %v577
    %v818 = vpack.c.b16 %v582, %v578
    %v819 = vpack.c.b16 %v583, %v579
    %v820 = vpack.c.b16 %v584, %v580
    %v821 = vpack.c.b16 %v589, %v585
    %v822 = vpack.c.b16 %v590, %v586
    %v823 = vpack.c.b16 %v591, %v587
    %v824 = vpack.c.b16 %v592, %v588
    %v825 = vpack.c.b16 %v597, %v593
    %v826 = vpack.c.b16 %v598, %v594
    %v827 = vpack.c.b16 %v599, %v595
    %v828 = vpack.c.b16 %v600, %v596
    %v829 = vpack.c.b16 %v605, %v601
    %v830 = vpack.c.b16 %v606, %v602
    %v831 = vpack.c.b16 %v607, %v603
    %v832 = vpack.c.b16 %v608, %v604
    %v833 = vpack.c.b16 %v613, %v609
    %v834 = vpack.c.b16 %v614, %v610
    %v835 = vpack.c.b16 %v615, %v611
    %v836 = vpack.c.b16 %v616, %v612
    %v837 = vpack.c.b16 %v621, %v617
    %v838 = vpack.c.b16 %v622, %v618
    %v839 = vpack.c.b16 %v623, %v619
    %v840 = vpack.c.b16 %v624, %v620
    %v841 = vpack.c.b16 %v629, %v625
    %v842 = vpack.c.b16 %v630, %v626
    %v843 = vpack.c.b16 %v631, %v627
    %v844 = vpack.c.b16 %v632, %v628
    %v845 = vpack.c.b16 %v637, %v633
    %v846 = vpack.c.b16 %v638, %v634
    %v847 = vpack.c.b16 %v639, %v635
    %v848 = vpack.c.b16 %v640, %v636
    %v849 = vpack.c.b16 %v645, %v641
    %v850 = vpack.c.b16 %v646, %v642
    %v851 = vpack.c.b16 %v647, %v643
    %v852 = vpack.c.b16 %v648, %v644
    %v853 = vpack.c.b16 %v653, %v649
    %v854 = vpack.c.b16 %v654, %v650
    %v855 = vpack.c.b16 %v655, %v651
    %v856 = vpack.c.b16 %v656, %v652
    %v857 = vpack.c.b16 %v661, %v657
    %v858 = vpack.c.b16 %v662, %v658
    %v859 = vpack.c.b16 %v663, %v659
    %v860 = vpack.c.b16 %v664, %v660
    %v861 = vpack.c.b16 %v669, %v665
    %v862 = vpack.c.b16 %v670, %v666
    %v863 = vpack.c.b16 %v671, %v667
    %v864 = vpack.c.b16 %v672, %v668
    %v865 = vpack.c.b16 %v677, %v673
    %v866 = vpack.c.b16 %v678, %v674
    %v867 = vpack.c.b16 %v679, %v675
    %v868 = vpack.c.b16 %v680, %v676
    %v869 = vpack.c.b16 %v685, %v681
    %v870 = vpack.c.b16 %v686, %v682
    %v871 = vpack.c.b16 %v687, %v683
    %v872 = vpack.c.b16 %v688, %v684
    %v873 = vpack.c.b16 %v693, %v689
    %v874 = vpack.c.b16 %v694, %v690
    %v875 = vpack.c.b16 %v695, %v691
    %v876 = vpack.c.b16 %v696, %v692
    %v877 = vpack.c.b16 %v701, %v697
    %v878 = vpack.c.b16 %v702, %v698
    %v879 = vpack.c.b16 %v703, %v699
    %v880 = vpack.c.b16 %v704, %v700
    %v881 = vpack.c.b16 %v709, %v705
    %v882 = vpack.c.b16 %v710, %v706
    %v883 = vpack.c.b16 %v711, %v707
    %v884 = vpack.c.b16 %v712, %v708
    %v885 = vpack.c.b16 %v717, %v713
    %v886 = vpack.c.b16 %v718, %v714
    %v887 = vpack.c.b16 %v719, %v715
    %v888 = vpack.c.b16 %v720, %v716
    %v889 = vpack.c.b16 %v725, %v721
    %v890 = vpack.c.b16 %v726, %v722
    %v891 = vpack.c.b16 %v727, %v723
    %v892 = vpack.c.b16 %v728, %v724
    %v893 = vpack.c.b16 %v733, %v729
    %v894 = vpack.c.b16 %v734, %v730
    %v895 = vpack.c.b16 %v735, %v731
    %v896 = vpack.c.b16 %v736, %v732
    %v897 = vpack.c.b16 %v741, %v737
    %v898 = vpack.c.b16 %v742, %v738
    %v899 = vpack.c.b16 %v743, %v739
    %v900 = vpack.c.b16 %v744, %v740
    %v901 = vpack.c.b16 %v749, %v745
    %v902 = vpack.c.b16 %v750, %v746
    %v903 = vpack.c.b16 %v751, %v747
    %v904 = vpack.c.b16 %v752, %v748
    %v905 = vpack.c.b16 %v757, %v753
    %v906 = vpack.c.b16 %v758, %v754
    %v907 = vpack.c.b16 %v759, %v755
    %v908 = vpack.c.b16 %v760, %v756
    %v909 = vpack.c.b16 %v765, %v761
    %v910 = vpack.c.b16 %v766, %v762
    %v911 = vpack.c.b16 %v767, %v763
    %v912 = vpack.c.b16 %v768, %v764
    %v913 = vpack.c.b16 %v773, %v769
    %v914 = vpack.c.b16 %v774, %v770
    %v915 = vpack.c.b16 %v775, %v771
    %v916 = vpack.c.b16 %v776, %v772
    %v917 = vpack.c.b16 %v781, %v777
    %v918 = vpack.c.b16 %v782, %v778
    %v919 = vpack.c.b16 %v783, %v779
    %v920 = vpack.c.b16 %v784, %v780
    %v921 = vpack.c.b16 %v789, %v785
    %v922 = vpack.c.b16 %v790, %v786
    %v923 = vpack.c.b16 %v791, %v787
    %v924 = vpack.c.b16 %v792, %v788
    %v925 = vpack.c.b16 %v797, %v793
    %v926 = vpack.c.b16 %v798, %v794
    %v927 = vpack.c.b16 %v799, %v795
    %v928 = vpack.c.b16 %v800, %v796
    %1057 = vmatprep.subr.bf16.mxu0 %v830
    %1058 = vmatpush1.bf16.msra.mxu0 %v829
    %1059 = vmatprep.subr.bf16.mxu0 %v826
    %1060 = vmatpush1.bf16.msra.mxu0 %v825
    %1061 = vmatprep.subr.bf16.mxu0 %v822
    %1062 = vmatpush1.bf16.msra.mxu0 %v821
    %1063 = vmatprep.subr.bf16.mxu0 %v818
    %1064 = vmatpush1.bf16.msra.mxu0 %v817
    %1065 = vmatprep.subr.bf16.mxu0 %v814
    %1066 = vmatpush1.bf16.msra.mxu0 %v813
    %1067 = vmatprep.subr.bf16.mxu0 %v810
    %1068 = vmatpush1.bf16.msra.mxu0 %v809
    %1069 = vmatprep.subr.bf16.mxu0 %v806
    %1070 = vmatpush1.bf16.msra.mxu0 %v805
    %1071 = vmatprep.subr.bf16.mxu0 %v802
    %1072 = vmatpush1.bf16.msra.mxu0 %v801
    %1073 = vmatprep.subr.bf16.mxu0 %v862
    %1074 = vmatpush2.bf16.msra.mxu0 %v861
    %1075 = vmatprep.subr.bf16.mxu0 %v858
    %1076 = vmatpush2.bf16.msra.mxu0 %v857
    %1077 = vmatprep.subr.bf16.mxu0 %v854
    %1078 = vmatpush2.bf16.msra.mxu0 %v853
    %1079 = vmatprep.subr.bf16.mxu0 %v850
    %1080 = vmatpush2.bf16.msra.mxu0 %v849
    %1081 = vmatprep.subr.bf16.mxu0 %v846
    %1082 = vmatpush2.bf16.msra.mxu0 %v845
    %1083 = vmatprep.subr.bf16.mxu0 %v842
    %1084 = vmatpush2.bf16.msra.mxu0 %v841
    %1085 = vmatprep.subr.bf16.mxu0 %v838
    %1086 = vmatpush2.bf16.msra.mxu0 %v837
    %1087 = vmatprep.subr.bf16.mxu0 %v834
    %1088 = vmatpush2.bf16.msra.mxu0 %v833
    %1089 = vmatprep.mubr.bf16.mxu0 %v264
    %1090 = vmatmul.mubr.bf16.gmra.mxu0 %v263
    %v1091 = vpop.f32.mrf.mxu0
    %v1092 = vadd.f32 %v400, %v1091
    %v1093 = vpop.f32.mrf.mxu0
    %v1094 = vadd.f32 %v404, %v1093
    %v1095 = vpop.f32.mrf.mxu0
    %v1096 = vadd.f32 %v400, %v1095
    %v1097 = vpop.f32.mrf.mxu0
    %v1098 = vadd.f32 %v404, %v1097
    %1099 = vdwg.mxu0
    %1100 = vmatprep.subr.bf16.mxu0 %v894
    %1101 = vmatpush1.bf16.msra.mxu0 %v893
    %1102 = vmatprep.subr.bf16.mxu0 %v890
    %1103 = vmatpush1.bf16.msra.mxu0 %v889
    %1104 = vmatprep.subr.bf16.mxu0 %v886
    %1105 = vmatpush1.bf16.msra.mxu0 %v885
    %1106 = vmatprep.subr.bf16.mxu0 %v882
    %1107 = vmatpush1.bf16.msra.mxu0 %v881
    %1108 = vmatprep.subr.bf16.mxu0 %v878
    %1109 = vmatpush1.bf16.msra.mxu0 %v877
    %1110 = vmatprep.subr.bf16.mxu0 %v874
    %1111 = vmatpush1.bf16.msra.mxu0 %v873
    %1112 = vmatprep.subr.bf16.mxu0 %v870
    %1113 = vmatpush1.bf16.msra.mxu0 %v869
    %1114 = vmatprep.subr.bf16.mxu0 %v866
    %1115 = vmatpush1.bf16.msra.mxu0 %v865
    %1116 = vmatprep.subr.bf16.mxu0 %v926
    %1117 = vmatpush2.bf16.msra.mxu0 %v925
    %1118 = vmatprep.subr.bf16.mxu0 %v922
    %1119 = vmatpush2.bf16.msra.mxu0 %v921
    %1120 = vmatprep.subr.bf16.mxu0 %v918
    %1121 = vmatpush2.bf16.msra.mxu0 %v917
    %1122 = vmatprep.subr.bf16.mxu0 %v914
    %1123 = vmatpush2.bf16.msra.mxu0 %v913
    %1124 = vmatprep.subr.bf16.mxu0 %v910
    %1125 = vmatpush2.bf16.msra.mxu0 %v909
    %1126 = vmatprep.subr.bf16.mxu0 %v906
    %1127 = vmatpush2.bf16.msra.mxu0 %v905
    %1128 = vmatprep.subr.bf16.mxu0 %v902
    %1129 = vmatpush2.bf16.msra.mxu0 %v901
    %1130 = vmatprep.subr.bf16.mxu0 %v898
    %1131 = vmatpush2.bf16.msra.mxu0 %v897
    %1132 = vmatprep.mubr.bf16.mxu0 %v266
    %1133 = vmatmul.mubr.bf16.gmra.mxu0 %v265
    %v1134 = vpop.f32.mrf.mxu0
    %v1135 = vadd.f32 %v1092, %v1134
    %v1136 = vpop.f32.mrf.mxu0
    %v1137 = vadd.f32 %v1094, %v1136
    %v1138 = vpop.f32.mrf.mxu0
    %v1139 = vadd.f32 %v1096, %v1138
    %v1140 = vpop.f32.mrf.mxu0
    %v1141 = vadd.f32 %v1098, %v1140
    %1142 = vdwg.mxu0
    %1143 = vmatprep.subr.bf16.mxu0 %v832
    %1144 = vmatpush1.bf16.msra.mxu0 %v831
    %1145 = vmatprep.subr.bf16.mxu0 %v828
    %1146 = vmatpush1.bf16.msra.mxu0 %v827
    %1147 = vmatprep.subr.bf16.mxu0 %v824
    %1148 = vmatpush1.bf16.msra.mxu0 %v823
    %1149 = vmatprep.subr.bf16.mxu0 %v820
    %1150 = vmatpush1.bf16.msra.mxu0 %v819
    %1151 = vmatprep.subr.bf16.mxu0 %v816
    %1152 = vmatpush1.bf16.msra.mxu0 %v815
    %1153 = vmatprep.subr.bf16.mxu0 %v812
    %1154 = vmatpush1.bf16.msra.mxu0 %v811
    %1155 = vmatprep.subr.bf16.mxu0 %v808
    %1156 = vmatpush1.bf16.msra.mxu0 %v807
    %1157 = vmatprep.subr.bf16.mxu0 %v804
    %1158 = vmatpush1.bf16.msra.mxu0 %v803
    %1159 = vmatprep.subr.bf16.mxu0 %v864
    %1160 = vmatpush2.bf16.msra.mxu0 %v863
    %1161 = vmatprep.subr.bf16.mxu0 %v860
    %1162 = vmatpush2.bf16.msra.mxu0 %v859
    %1163 = vmatprep.subr.bf16.mxu0 %v856
    %1164 = vmatpush2.bf16.msra.mxu0 %v855
    %1165 = vmatprep.subr.bf16.mxu0 %v852
    %1166 = vmatpush2.bf16.msra.mxu0 %v851
    %1167 = vmatprep.subr.bf16.mxu0 %v848
    %1168 = vmatpush2.bf16.msra.mxu0 %v847
    %1169 = vmatprep.subr.bf16.mxu0 %v844
    %1170 = vmatpush2.bf16.msra.mxu0 %v843
    %1171 = vmatprep.subr.bf16.mxu0 %v840
    %1172 = vmatpush2.bf16.msra.mxu0 %v839
    %1173 = vmatprep.subr.bf16.mxu0 %v836
    %1174 = vmatpush2.bf16.msra.mxu0 %v835
    %1175 = vmatprep.mubr.bf16.mxu0 %v264
    %1176 = vmatmul.mubr.bf16.gmra.mxu0 %v263
    %v1177 = vpop.f32.mrf.mxu0
    %v1178 = vadd.f32 %v408, %v1177
    %v1179 = vpop.f32.mrf.mxu0
    %v1180 = vadd.f32 %v412, %v1179
    %v1181 = vpop.f32.mrf.mxu0
    %v1182 = vadd.f32 %v408, %v1181
    %v1183 = vpop.f32.mrf.mxu0
    %v1184 = vadd.f32 %v412, %v1183
    %1185 = vdwg.mxu0
    %1186 = vmatprep.subr.bf16.mxu0 %v896
    %1187 = vmatpush1.bf16.msra.mxu0 %v895
    %1188 = vmatprep.subr.bf16.mxu0 %v892
    %1189 = vmatpush1.bf16.msra.mxu0 %v891
    %1190 = vmatprep.subr.bf16.mxu0 %v888
    %1191 = vmatpush1.bf16.msra.mxu0 %v887
    %1192 = vmatprep.subr.bf16.mxu0 %v884
    %1193 = vmatpush1.bf16.msra.mxu0 %v883
    %1194 = vmatprep.subr.bf16.mxu0 %v880
    %1195 = vmatpush1.bf16.msra.mxu0 %v879
    %1196 = vmatprep.subr.bf16.mxu0 %v876
    %1197 = vmatpush1.bf16.msra.mxu0 %v875
    %1198 = vmatprep.subr.bf16.mxu0 %v872
    %1199 = vmatpush1.bf16.msra.mxu0 %v871
    %1200 = vmatprep.subr.bf16.mxu0 %v868
    %1201 = vmatpush1.bf16.msra.mxu0 %v867
    %1202 = vmatprep.subr.bf16.mxu0 %v928
    %1203 = vmatpush2.bf16.msra.mxu0 %v927
    %1204 = vmatprep.subr.bf16.mxu0 %v924
    %1205 = vmatpush2.bf16.msra.mxu0 %v923
    %1206 = vmatprep.subr.bf16.mxu0 %v920
    %1207 = vmatpush2.bf16.msra.mxu0 %v919
    %1208 = vmatprep.subr.bf16.mxu0 %v916
    %1209 = vmatpush2.bf16.msra.mxu0 %v915
    %1210 = vmatprep.subr.bf16.mxu0 %v912
    %1211 = vmatpush2.bf16.msra.mxu0 %v911
    %1212 = vmatprep.subr.bf16.mxu0 %v908
    %1213 = vmatpush2.bf16.msra.mxu0 %v907
    %1214 = vmatprep.subr.bf16.mxu0 %v904
    %1215 = vmatpush2.bf16.msra.mxu0 %v903
    %1216 = vmatprep.subr.bf16.mxu0 %v900
    %1217 = vmatpush2.bf16.msra.mxu0 %v899
    %1218 = vmatprep.mubr.bf16.mxu0 %v266
    %1219 = vmatmul.mubr.bf16.gmra.mxu0 %v265
    %v1220 = vpop.f32.mrf.mxu0
    %v1221 = vadd.f32 %v1178, %v1220
    %v1222 = vpop.f32.mrf.mxu0
    %v1223 = vadd.f32 %v1180, %v1222
    %v1224 = vpop.f32.mrf.mxu0
    %v1225 = vadd.f32 %v1182, %v1224
    %v1226 = vpop.f32.mrf.mxu0
    %v1227 = vadd.f32 %v1184, %v1226
    %1228 = vdwg.mxu0
    %v1229 = vmax.f32 %v1135, 0.0
    %v1230 = vmax.f32 %v1137, 0.0
    %v1231 = vmax.f32 %v1221, 0.0
    %v1232 = vmax.f32 %v1223, 0.0
    %v1233 = vmax.f32 %v1139, 0.0
    %v1234 = vmax.f32 %v1141, 0.0
    %v1235 = vmax.f32 %v1225, 0.0
    %v1236 = vmax.f32 %v1227, 0.0
    %v1237 = vpack.c.bf16 %v1233, %v1229
    %v1238 = vpack.c.bf16 %v1234, %v1230
    %v1239 = vpack.c.bf16 %v1235, %v1231
    %v1240 = vpack.c.bf16 %v1236, %v1232
    %v1241 = vld [vmem:[#allocation6] sm:$0xff]
    %v1242 = vld [vmem:[#allocation6 + $0x8] sm:$0xff]
    %v1243 = vld [vmem:[#allocation6 + $0x10] sm:$0xff]
    %v1244 = vld [vmem:[#allocation6 + $0x18] sm:$0xff]
    %v1245 = vld [vmem:[#allocation6 + $0x20] sm:$0xff]
    %v1246 = vld [vmem:[#allocation6 + $0x28] sm:$0xff]
    %v1247 = vld [vmem:[#allocation6 + $0x30] sm:$0xff]
    %v1248 = vld [vmem:[#allocation6 + $0x38] sm:$0xff]
    %v1249 = vld [vmem:[#allocation6 + $0x40] sm:$0xff]
    %v1250 = vld [vmem:[#allocation6 + $0x48] sm:$0xff]
    %v1251 = vld [vmem:[#allocation6 + $0x50] sm:$0xff]
    %v1252 = vld [vmem:[#allocation6 + $0x58] sm:$0xff]
    %v1253 = vld [vmem:[#allocation6 + $0x60] sm:$0xff]
    %v1254 = vld [vmem:[#allocation6 + $0x68] sm:$0xff]
    %v1255 = vld [vmem:[#allocation6 + $0x70] sm:$0xff]
    %v1256 = vld [vmem:[#allocation6 + $0x78] sm:$0xff]
    %v1257 = vld [vmem:[#allocation6 + $0x80] sm:$0xff]
    %v1258 = vld [vmem:[#allocation6 + $0x88] sm:$0xff]
    %v1259 = vld [vmem:[#allocation6 + $0x90] sm:$0xff]
    %v1260 = vld [vmem:[#allocation6 + $0x98] sm:$0xff]
    %v1261 = vld [vmem:[#allocation6 + $0xa0] sm:$0xff]
    %v1262 = vld [vmem:[#allocation6 + $0xa8] sm:$0xff]
    %v1263 = vld [vmem:[#allocation6 + $0xb0] sm:$0xff]
    %v1264 = vld [vmem:[#allocation6 + $0xb8] sm:$0xff]
    %v1265 = vld [vmem:[#allocation6 + $0xc0] sm:$0xff]
    %v1266 = vld [vmem:[#allocation6 + $0xc8] sm:$0xff]
    %v1267 = vld [vmem:[#allocation6 + $0xd0] sm:$0xff]
    %v1268 = vld [vmem:[#allocation6 + $0xd8] sm:$0xff]
    %v1269 = vld [vmem:[#allocation6 + $0xe0] sm:$0xff]
    %v1270 = vld [vmem:[#allocation6 + $0xe8] sm:$0xff]
    %v1271 = vld [vmem:[#allocation6 + $0xf0] sm:$0xff]
    %v1272 = vld [vmem:[#allocation6 + $0xf8] sm:$0xff]
    %v1273 = vld [vmem:[#allocation6 + $0x100] sm:$0xff]
    %v1274 = vld [vmem:[#allocation6 + $0x108] sm:$0xff]
    %v1275 = vld [vmem:[#allocation6 + $0x110] sm:$0xff]
    %v1276 = vld [vmem:[#allocation6 + $0x118] sm:$0xff]
    %v1277 = vld [vmem:[#allocation6 + $0x120] sm:$0xff]
    %v1278 = vld [vmem:[#allocation6 + $0x128] sm:$0xff]
    %v1279 = vld [vmem:[#allocation6 + $0x130] sm:$0xff]
    %v1280 = vld [vmem:[#allocation6 + $0x138] sm:$0xff]
    %v1281 = vld [vmem:[#allocation6 + $0x140] sm:$0xff]
    %v1282 = vld [vmem:[#allocation6 + $0x148] sm:$0xff]
    %v1283 = vld [vmem:[#allocation6 + $0x150] sm:$0xff]
    %v1284 = vld [vmem:[#allocation6 + $0x158] sm:$0xff]
    %v1285 = vld [vmem:[#allocation6 + $0x160] sm:$0xff]
    %v1286 = vld [vmem:[#allocation6 + $0x168] sm:$0xff]
    %v1287 = vld [vmem:[#allocation6 + $0x170] sm:$0xff]
    %v1288 = vld [vmem:[#allocation6 + $0x178] sm:$0xff]
    %v1289 = vld [vmem:[#allocation6 + $0x180] sm:$0xff]
    %v1290 = vld [vmem:[#allocation6 + $0x188] sm:$0xff]
    %v1291 = vld [vmem:[#allocation6 + $0x190] sm:$0xff]
    %v1292 = vld [vmem:[#allocation6 + $0x198] sm:$0xff]
    %v1293 = vld [vmem:[#allocation6 + $0x1a0] sm:$0xff]
    %v1294 = vld [vmem:[#allocation6 + $0x1a8] sm:$0xff]
    %v1295 = vld [vmem:[#allocation6 + $0x1b0] sm:$0xff]
    %v1296 = vld [vmem:[#allocation6 + $0x1b8] sm:$0xff]
    %v1297 = vld [vmem:[#allocation6 + $0x1c0] sm:$0xff]
    %v1298 = vld [vmem:[#allocation6 + $0x1c8] sm:$0xff]
    %v1299 = vld [vmem:[#allocation6 + $0x1d0] sm:$0xff]
    %v1300 = vld [vmem:[#allocation6 + $0x1d8] sm:$0xff]
    %v1301 = vld [vmem:[#allocation6 + $0x1e0] sm:$0xff]
    %v1302 = vld [vmem:[#allocation6 + $0x1e8] sm:$0xff]
    %v1303 = vld [vmem:[#allocation6 + $0x1f0] sm:$0xff]
    %v1304 = vld [vmem:[#allocation6 + $0x1f8] sm:$0xff]
    %v1305 = vld [vmem:[#allocation6 + $0x200] sm:$0xff]
    %v1306 = vld [vmem:[#allocation6 + $0x208] sm:$0xff]
    %v1307 = vld [vmem:[#allocation6 + $0x210] sm:$0xff]
    %v1308 = vld [vmem:[#allocation6 + $0x218] sm:$0xff]
    %v1309 = vld [vmem:[#allocation6 + $0x220] sm:$0xff]
    %v1310 = vld [vmem:[#allocation6 + $0x228] sm:$0xff]
    %v1311 = vld [vmem:[#allocation6 + $0x230] sm:$0xff]
    %v1312 = vld [vmem:[#allocation6 + $0x238] sm:$0xff]
    %v1313 = vld [vmem:[#allocation6 + $0x240] sm:$0xff]
    %v1314 = vld [vmem:[#allocation6 + $0x248] sm:$0xff]
    %v1315 = vld [vmem:[#allocation6 + $0x250] sm:$0xff]
    %v1316 = vld [vmem:[#allocation6 + $0x258] sm:$0xff]
    %v1317 = vld [vmem:[#allocation6 + $0x260] sm:$0xff]
    %v1318 = vld [vmem:[#allocation6 + $0x268] sm:$0xff]
    %v1319 = vld [vmem:[#allocation6 + $0x270] sm:$0xff]
    %v1320 = vld [vmem:[#allocation6 + $0x278] sm:$0xff]
    %v1321 = vld [vmem:[#allocation6 + $0x280] sm:$0xff]
    %v1322 = vld [vmem:[#allocation6 + $0x288] sm:$0xff]
    %v1323 = vld [vmem:[#allocation6 + $0x290] sm:$0xff]
    %v1324 = vld [vmem:[#allocation6 + $0x298] sm:$0xff]
    %v1325 = vld [vmem:[#allocation6 + $0x2a0] sm:$0xff]
    %v1326 = vld [vmem:[#allocation6 + $0x2a8] sm:$0xff]
    %v1327 = vld [vmem:[#allocation6 + $0x2b0] sm:$0xff]
    %v1328 = vld [vmem:[#allocation6 + $0x2b8] sm:$0xff]
    %v1329 = vld [vmem:[#allocation6 + $0x2c0] sm:$0xff]
    %v1330 = vld [vmem:[#allocation6 + $0x2c8] sm:$0xff]
    %v1331 = vld [vmem:[#allocation6 + $0x2d0] sm:$0xff]
    %v1332 = vld [vmem:[#allocation6 + $0x2d8] sm:$0xff]
    %v1333 = vld [vmem:[#allocation6 + $0x2e0] sm:$0xff]
    %v1334 = vld [vmem:[#allocation6 + $0x2e8] sm:$0xff]
    %v1335 = vld [vmem:[#allocation6 + $0x2f0] sm:$0xff]
    %v1336 = vld [vmem:[#allocation6 + $0x2f8] sm:$0xff]
    %v1337 = vld [vmem:[#allocation6 + $0x300] sm:$0xff]
    %v1338 = vld [vmem:[#allocation6 + $0x308] sm:$0xff]
    %v1339 = vld [vmem:[#allocation6 + $0x310] sm:$0xff]
    %v1340 = vld [vmem:[#allocation6 + $0x318] sm:$0xff]
    %v1341 = vld [vmem:[#allocation6 + $0x320] sm:$0xff]
    %v1342 = vld [vmem:[#allocation6 + $0x328] sm:$0xff]
    %v1343 = vld [vmem:[#allocation6 + $0x330] sm:$0xff]
    %v1344 = vld [vmem:[#allocation6 + $0x338] sm:$0xff]
    %v1345 = vld [vmem:[#allocation6 + $0x340] sm:$0xff]
    %v1346 = vld [vmem:[#allocation6 + $0x348] sm:$0xff]
    %v1347 = vld [vmem:[#allocation6 + $0x350] sm:$0xff]
    %v1348 = vld [vmem:[#allocation6 + $0x358] sm:$0xff]
    %v1349 = vld [vmem:[#allocation6 + $0x360] sm:$0xff]
    %v1350 = vld [vmem:[#allocation6 + $0x368] sm:$0xff]
    %v1351 = vld [vmem:[#allocation6 + $0x370] sm:$0xff]
    %v1352 = vld [vmem:[#allocation6 + $0x378] sm:$0xff]
    %v1353 = vld [vmem:[#allocation6 + $0x380] sm:$0xff]
    %v1354 = vld [vmem:[#allocation6 + $0x388] sm:$0xff]
    %v1355 = vld [vmem:[#allocation6 + $0x390] sm:$0xff]
    %v1356 = vld [vmem:[#allocation6 + $0x398] sm:$0xff]
    %v1357 = vld [vmem:[#allocation6 + $0x3a0] sm:$0xff]
    %v1358 = vld [vmem:[#allocation6 + $0x3a8] sm:$0xff]
    %v1359 = vld [vmem:[#allocation6 + $0x3b0] sm:$0xff]
    %v1360 = vld [vmem:[#allocation6 + $0x3b8] sm:$0xff]
    %v1361 = vld [vmem:[#allocation6 + $0x3c0] sm:$0xff]
    %v1362 = vld [vmem:[#allocation6 + $0x3c8] sm:$0xff]
    %v1363 = vld [vmem:[#allocation6 + $0x3d0] sm:$0xff]
    %v1364 = vld [vmem:[#allocation6 + $0x3d8] sm:$0xff]
    %v1365 = vld [vmem:[#allocation6 + $0x3e0] sm:$0xff]
    %v1366 = vld [vmem:[#allocation6 + $0x3e8] sm:$0xff]
    %v1367 = vld [vmem:[#allocation6 + $0x3f0] sm:$0xff]
    %v1368 = vld [vmem:[#allocation6 + $0x3f8] sm:$0xff]
    %v1369 = vld [vmem:[%s6] sm:$0xf]
    %v1371 = vlaneseq
    %v1372 = vshrl.u32 %v1371, 7
    %v1373 = vsub.s32 0, %v1372
    %v1374 = vrot.slane %v1369, %v1373
    %v1375 = vlaneseq
    %v1376 = vshrl.u32 %v1375, 7
    %v1377 = vsub.s32 1, %v1376
    %v1378 = vrot.slane %v1369, %v1377
    %v1379 = vlaneseq
    %v1380 = vshrl.u32 %v1379, 7
    %v1381 = vsub.s32 2, %v1380
    %v1382 = vrot.slane %v1369, %v1381
    %v1383 = vlaneseq
    %v1384 = vshrl.u32 %v1383, 7
    %v1385 = vsub.s32 3, %v1384
    %v1386 = vrot.slane %v1369, %v1385
    %v1519 = vunpack.c.l.b16 %v1241
    %v1520 = vunpack.c.h.b16 %v1241
    %v1521 = vunpack.c.l.b16 %v1242
    %v1522 = vunpack.c.h.b16 %v1242
    %v1523 = vunpack.c.l.b16 %v1243
    %v1524 = vunpack.c.h.b16 %v1243
    %v1525 = vunpack.c.l.b16 %v1244
    %v1526 = vunpack.c.h.b16 %v1244
    %v1527 = vunpack.c.l.b16 %v1245
    %v1528 = vunpack.c.h.b16 %v1245
    %v1529 = vunpack.c.l.b16 %v1246
    %v1530 = vunpack.c.h.b16 %v1246
    %v1531 = vunpack.c.l.b16 %v1247
    %v1532 = vunpack.c.h.b16 %v1247
    %v1533 = vunpack.c.l.b16 %v1248
    %v1534 = vunpack.c.h.b16 %v1248
    %v1535 = vunpack.c.l.b16 %v1249
    %v1536 = vunpack.c.h.b16 %v1249
    %v1537 = vunpack.c.l.b16 %v1250
    %v1538 = vunpack.c.h.b16 %v1250
    %v1539 = vunpack.c.l.b16 %v1251
    %v1540 = vunpack.c.h.b16 %v1251
    %v1541 = vunpack.c.l.b16 %v1252
    %v1542 = vunpack.c.h.b16 %v1252
    %v1543 = vunpack.c.l.b16 %v1253
    %v1544 = vunpack.c.h.b16 %v1253
    %v1545 = vunpack.c.l.b16 %v1254
    %v1546 = vunpack.c.h.b16 %v1254
    %v1547 = vunpack.c.l.b16 %v1255
    %v1548 = vunpack.c.h.b16 %v1255
    %v1549 = vunpack.c.l.b16 %v1256
    %v1550 = vunpack.c.h.b16 %v1256
    %v1551 = vunpack.c.l.b16 %v1257
    %v1552 = vunpack.c.h.b16 %v1257
    %v1553 = vunpack.c.l.b16 %v1258
    %v1554 = vunpack.c.h.b16 %v1258
    %v1555 = vunpack.c.l.b16 %v1259
    %v1556 = vunpack.c.h.b16 %v1259
    %v1557 = vunpack.c.l.b16 %v1260
    %v1558 = vunpack.c.h.b16 %v1260
    %v1559 = vunpack.c.l.b16 %v1261
    %v1560 = vunpack.c.h.b16 %v1261
    %v1561 = vunpack.c.l.b16 %v1262
    %v1562 = vunpack.c.h.b16 %v1262
    %v1563 = vunpack.c.l.b16 %v1263
    %v1564 = vunpack.c.h.b16 %v1263
    %v1565 = vunpack.c.l.b16 %v1264
    %v1566 = vunpack.c.h.b16 %v1264
    %v1567 = vunpack.c.l.b16 %v1265
    %v1568 = vunpack.c.h.b16 %v1265
    %v1569 = vunpack.c.l.b16 %v1266
    %v1570 = vunpack.c.h.b16 %v1266
    %v1571 = vunpack.c.l.b16 %v1267
    %v1572 = vunpack.c.h.b16 %v1267
    %v1573 = vunpack.c.l.b16 %v1268
    %v1574 = vunpack.c.h.b16 %v1268
    %v1575 = vunpack.c.l.b16 %v1269
    %v1576 = vunpack.c.h.b16 %v1269
    %v1577 = vunpack.c.l.b16 %v1270
    %v1578 = vunpack.c.h.b16 %v1270
    %v1579 = vunpack.c.l.b16 %v1271
    %v1580 = vunpack.c.h.b16 %v1271
    %v1581 = vunpack.c.l.b16 %v1272
    %v1582 = vunpack.c.h.b16 %v1272
    %v1583 = vunpack.c.l.b16 %v1273
    %v1584 = vunpack.c.h.b16 %v1273
    %v1585 = vunpack.c.l.b16 %v1274
    %v1586 = vunpack.c.h.b16 %v1274
    %v1587 = vunpack.c.l.b16 %v1275
    %v1588 = vunpack.c.h.b16 %v1275
    %v1589 = vunpack.c.l.b16 %v1276
    %v1590 = vunpack.c.h.b16 %v1276
    %v1591 = vunpack.c.l.b16 %v1277
    %v1592 = vunpack.c.h.b16 %v1277
    %v1593 = vunpack.c.l.b16 %v1278
    %v1594 = vunpack.c.h.b16 %v1278
    %v1595 = vunpack.c.l.b16 %v1279
    %v1596 = vunpack.c.h.b16 %v1279
    %v1597 = vunpack.c.l.b16 %v1280
    %v1598 = vunpack.c.h.b16 %v1280
    %v1599 = vunpack.c.l.b16 %v1281
    %v1600 = vunpack.c.h.b16 %v1281
    %v1601 = vunpack.c.l.b16 %v1282
    %v1602 = vunpack.c.h.b16 %v1282
    %v1603 = vunpack.c.l.b16 %v1283
    %v1604 = vunpack.c.h.b16 %v1283
    %v1605 = vunpack.c.l.b16 %v1284
    %v1606 = vunpack.c.h.b16 %v1284
    %v1607 = vunpack.c.l.b16 %v1285
    %v1608 = vunpack.c.h.b16 %v1285
    %v1609 = vunpack.c.l.b16 %v1286
    %v1610 = vunpack.c.h.b16 %v1286
    %v1611 = vunpack.c.l.b16 %v1287
    %v1612 = vunpack.c.h.b16 %v1287
    %v1613 = vunpack.c.l.b16 %v1288
    %v1614 = vunpack.c.h.b16 %v1288
    %v1615 = vunpack.c.l.b16 %v1289
    %v1616 = vunpack.c.h.b16 %v1289
    %v1617 = vunpack.c.l.b16 %v1290
    %v1618 = vunpack.c.h.b16 %v1290
    %v1619 = vunpack.c.l.b16 %v1291
    %v1620 = vunpack.c.h.b16 %v1291
    %v1621 = vunpack.c.l.b16 %v1292
    %v1622 = vunpack.c.h.b16 %v1292
    %v1623 = vunpack.c.l.b16 %v1293
    %v1624 = vunpack.c.h.b16 %v1293
    %v1625 = vunpack.c.l.b16 %v1294
    %v1626 = vunpack.c.h.b16 %v1294
    %v1627 = vunpack.c.l.b16 %v1295
    %v1628 = vunpack.c.h.b16 %v1295
    %v1629 = vunpack.c.l.b16 %v1296
    %v1630 = vunpack.c.h.b16 %v1296
    %v1631 = vunpack.c.l.b16 %v1297
    %v1632 = vunpack.c.h.b16 %v1297
    %v1633 = vunpack.c.l.b16 %v1298
    %v1634 = vunpack.c.h.b16 %v1298
    %v1635 = vunpack.c.l.b16 %v1299
    %v1636 = vunpack.c.h.b16 %v1299
    %v1637 = vunpack.c.l.b16 %v1300
    %v1638 = vunpack.c.h.b16 %v1300
    %v1639 = vunpack.c.l.b16 %v1301
    %v1640 = vunpack.c.h.b16 %v1301
    %v1641 = vunpack.c.l.b16 %v1302
    %v1642 = vunpack.c.h.b16 %v1302
    %v1643 = vunpack.c.l.b16 %v1303
    %v1644 = vunpack.c.h.b16 %v1303
    %v1645 = vunpack.c.l.b16 %v1304
    %v1646 = vunpack.c.h.b16 %v1304
    %v1647 = vunpack.c.l.b16 %v1305
    %v1648 = vunpack.c.h.b16 %v1305
    %v1649 = vunpack.c.l.b16 %v1306
    %v1650 = vunpack.c.h.b16 %v1306
    %v1651 = vunpack.c.l.b16 %v1307
    %v1652 = vunpack.c.h.b16 %v1307
    %v1653 = vunpack.c.l.b16 %v1308
    %v1654 = vunpack.c.h.b16 %v1308
    %v1655 = vunpack.c.l.b16 %v1309
    %v1656 = vunpack.c.h.b16 %v1309
    %v1657 = vunpack.c.l.b16 %v1310
    %v1658 = vunpack.c.h.b16 %v1310
    %v1659 = vunpack.c.l.b16 %v1311
    %v1660 = vunpack.c.h.b16 %v1311
    %v1661 = vunpack.c.l.b16 %v1312
    %v1662 = vunpack.c.h.b16 %v1312
    %v1663 = vunpack.c.l.b16 %v1313
    %v1664 = vunpack.c.h.b16 %v1313
    %v1665 = vunpack.c.l.b16 %v1314
    %v1666 = vunpack.c.h.b16 %v1314
    %v1667 = vunpack.c.l.b16 %v1315
    %v1668 = vunpack.c.h.b16 %v1315
    %v1669 = vunpack.c.l.b16 %v1316
    %v1670 = vunpack.c.h.b16 %v1316
    %v1671 = vunpack.c.l.b16 %v1317
    %v1672 = vunpack.c.h.b16 %v1317
    %v1673 = vunpack.c.l.b16 %v1318
    %v1674 = vunpack.c.h.b16 %v1318
    %v1675 = vunpack.c.l.b16 %v1319
    %v1676 = vunpack.c.h.b16 %v1319
    %v1677 = vunpack.c.l.b16 %v1320
    %v1678 = vunpack.c.h.b16 %v1320
    %v1679 = vunpack.c.l.b16 %v1321
    %v1680 = vunpack.c.h.b16 %v1321
    %v1681 = vunpack.c.l.b16 %v1322
    %v1682 = vunpack.c.h.b16 %v1322
    %v1683 = vunpack.c.l.b16 %v1323
    %v1684 = vunpack.c.h.b16 %v1323
    %v1685 = vunpack.c.l.b16 %v1324
    %v1686 = vunpack.c.h.b16 %v1324
    %v1687 = vunpack.c.l.b16 %v1325
    %v1688 = vunpack.c.h.b16 %v1325
    %v1689 = vunpack.c.l.b16 %v1326
    %v1690 = vunpack.c.h.b16 %v1326
    %v1691 = vunpack.c.l.b16 %v1327
    %v1692 = vunpack.c.h.b16 %v1327
    %v1693 = vunpack.c.l.b16 %v1328
    %v1694 = vunpack.c.h.b16 %v1328
    %v1695 = vunpack.c.l.b16 %v1329
    %v1696 = vunpack.c.h.b16 %v1329
    %v1697 = vunpack.c.l.b16 %v1330
    %v1698 = vunpack.c.h.b16 %v1330
    %v1699 = vunpack.c.l.b16 %v1331
    %v1700 = vunpack.c.h.b16 %v1331
    %v1701 = vunpack.c.l.b16 %v1332
    %v1702 = vunpack.c.h.b16 %v1332
    %v1703 = vunpack.c.l.b16 %v1333
    %v1704 = vunpack.c.h.b16 %v1333
    %v1705 = vunpack.c.l.b16 %v1334
    %v1706 = vunpack.c.h.b16 %v1334
    %v1707 = vunpack.c.l.b16 %v1335
    %v1708 = vunpack.c.h.b16 %v1335
    %v1709 = vunpack.c.l.b16 %v1336
    %v1710 = vunpack.c.h.b16 %v1336
    %v1711 = vunpack.c.l.b16 %v1337
    %v1712 = vunpack.c.h.b16 %v1337
    %v1713 = vunpack.c.l.b16 %v1338
    %v1714 = vunpack.c.h.b16 %v1338
    %v1715 = vunpack.c.l.b16 %v1339
    %v1716 = vunpack.c.h.b16 %v1339
    %v1717 = vunpack.c.l.b16 %v1340
    %v1718 = vunpack.c.h.b16 %v1340
    %v1719 = vunpack.c.l.b16 %v1341
    %v1720 = vunpack.c.h.b16 %v1341
    %v1721 = vunpack.c.l.b16 %v1342
    %v1722 = vunpack.c.h.b16 %v1342
    %v1723 = vunpack.c.l.b16 %v1343
    %v1724 = vunpack.c.h.b16 %v1343
    %v1725 = vunpack.c.l.b16 %v1344
    %v1726 = vunpack.c.h.b16 %v1344
    %v1727 = vunpack.c.l.b16 %v1345
    %v1728 = vunpack.c.h.b16 %v1345
    %v1729 = vunpack.c.l.b16 %v1346
    %v1730 = vunpack.c.h.b16 %v1346
    %v1731 = vunpack.c.l.b16 %v1347
    %v1732 = vunpack.c.h.b16 %v1347
    %v1733 = vunpack.c.l.b16 %v1348
    %v1734 = vunpack.c.h.b16 %v1348
    %v1735 = vunpack.c.l.b16 %v1349
    %v1736 = vunpack.c.h.b16 %v1349
    %v1737 = vunpack.c.l.b16 %v1350
    %v1738 = vunpack.c.h.b16 %v1350
    %v1739 = vunpack.c.l.b16 %v1351
    %v1740 = vunpack.c.h.b16 %v1351
    %v1741 = vunpack.c.l.b16 %v1352
    %v1742 = vunpack.c.h.b16 %v1352
    %v1743 = vunpack.c.l.b16 %v1353
    %v1744 = vunpack.c.h.b16 %v1353
    %v1745 = vunpack.c.l.b16 %v1354
    %v1746 = vunpack.c.h.b16 %v1354
    %v1747 = vunpack.c.l.b16 %v1355
    %v1748 = vunpack.c.h.b16 %v1355
    %v1749 = vunpack.c.l.b16 %v1356
    %v1750 = vunpack.c.h.b16 %v1356
    %v1751 = vunpack.c.l.b16 %v1357
    %v1752 = vunpack.c.h.b16 %v1357
    %v1753 = vunpack.c.l.b16 %v1358
    %v1754 = vunpack.c.h.b16 %v1358
    %v1755 = vunpack.c.l.b16 %v1359
    %v1756 = vunpack.c.h.b16 %v1359
    %v1757 = vunpack.c.l.b16 %v1360
    %v1758 = vunpack.c.h.b16 %v1360
    %v1759 = vunpack.c.l.b16 %v1361
    %v1760 = vunpack.c.h.b16 %v1361
    %v1761 = vunpack.c.l.b16 %v1362
    %v1762 = vunpack.c.h.b16 %v1362
    %v1763 = vunpack.c.l.b16 %v1363
    %v1764 = vunpack.c.h.b16 %v1363
    %v1765 = vunpack.c.l.b16 %v1364
    %v1766 = vunpack.c.h.b16 %v1364
    %v1767 = vunpack.c.l.b16 %v1365
    %v1768 = vunpack.c.h.b16 %v1365
    %v1769 = vunpack.c.l.b16 %v1366
    %v1770 = vunpack.c.h.b16 %v1366
    %v1771 = vunpack.c.l.b16 %v1367
    %v1772 = vunpack.c.h.b16 %v1367
    %v1773 = vunpack.c.l.b16 %v1368
    %v1774 = vunpack.c.h.b16 %v1368
    %v1775 = vpack.c.b16 %v1523, %v1519
    %v1776 = vpack.c.b16 %v1524, %v1520
    %v1777 = vpack.c.b16 %v1525, %v1521
    %v1778 = vpack.c.b16 %v1526, %v1522
    %v1779 = vpack.c.b16 %v1531, %v1527
    %v1780 = vpack.c.b16 %v1532, %v1528
    %v1781 = vpack.c.b16 %v1533, %v1529
    %v1782 = vpack.c.b16 %v1534, %v1530
    %v1783 = vpack.c.b16 %v1539, %v1535
    %v1784 = vpack.c.b16 %v1540, %v1536
    %v1785 = vpack.c.b16 %v1541, %v1537
    %v1786 = vpack.c.b16 %v1542, %v1538
    %v1787 = vpack.c.b16 %v1547, %v1543
    %v1788 = vpack.c.b16 %v1548, %v1544
    %v1789 = vpack.c.b16 %v1549, %v1545
    %v1790 = vpack.c.b16 %v1550, %v1546
    %v1791 = vpack.c.b16 %v1555, %v1551
    %v1792 = vpack.c.b16 %v1556, %v1552
    %v1793 = vpack.c.b16 %v1557, %v1553
    %v1794 = vpack.c.b16 %v1558, %v1554
    %v1795 = vpack.c.b16 %v1563, %v1559
    %v1796 = vpack.c.b16 %v1564, %v1560
    %v1797 = vpack.c.b16 %v1565, %v1561
    %v1798 = vpack.c.b16 %v1566, %v1562
    %v1799 = vpack.c.b16 %v1571, %v1567
    %v1800 = vpack.c.b16 %v1572, %v1568
    %v1801 = vpack.c.b16 %v1573, %v1569
    %v1802 = vpack.c.b16 %v1574, %v1570
    %v1803 = vpack.c.b16 %v1579, %v1575
    %v1804 = vpack.c.b16 %v1580, %v1576
    %v1805 = vpack.c.b16 %v1581, %v1577
    %v1806 = vpack.c.b16 %v1582, %v1578
    %v1807 = vpack.c.b16 %v1587, %v1583
    %v1808 = vpack.c.b16 %v1588, %v1584
    %v1809 = vpack.c.b16 %v1589, %v1585
    %v1810 = vpack.c.b16 %v1590, %v1586
    %v1811 = vpack.c.b16 %v1595, %v1591
    %v1812 = vpack.c.b16 %v1596, %v1592
    %v1813 = vpack.c.b16 %v1597, %v1593
    %v1814 = vpack.c.b16 %v1598, %v1594
    %v1815 = vpack.c.b16 %v1603, %v1599
    %v1816 = vpack.c.b16 %v1604, %v1600
    %v1817 = vpack.c.b16 %v1605, %v1601
    %v1818 = vpack.c.b16 %v1606, %v1602
    %v1819 = vpack.c.b16 %v1611, %v1607
    %v1820 = vpack.c.b16 %v1612, %v1608
    %v1821 = vpack.c.b16 %v1613, %v1609
    %v1822 = vpack.c.b16 %v1614, %v1610
    %v1823 = vpack.c.b16 %v1619, %v1615
    %v1824 = vpack.c.b16 %v1620, %v1616
    %v1825 = vpack.c.b16 %v1621, %v1617
    %v1826 = vpack.c.b16 %v1622, %v1618
    %v1827 = vpack.c.b16 %v1627, %v1623
    %v1828 = vpack.c.b16 %v1628, %v1624
    %v1829 = vpack.c.b16 %v1629, %v1625
    %v1830 = vpack.c.b16 %v1630, %v1626
    %v1831 = vpack.c.b16 %v1635, %v1631
    %v1832 = vpack.c.b16 %v1636, %v1632
    %v1833 = vpack.c.b16 %v1637, %v1633
    %v1834 = vpack.c.b16 %v1638, %v1634
    %v1835 = vpack.c.b16 %v1643, %v1639
    %v1836 = vpack.c.b16 %v1644, %v1640
    %v1837 = vpack.c.b16 %v1645, %v1641
    %v1838 = vpack.c.b16 %v1646, %v1642
    %v1839 = vpack.c.b16 %v1651, %v1647
    %v1840 = vpack.c.b16 %v1652, %v1648
    %v1841 = vpack.c.b16 %v1653, %v1649
    %v1842 = vpack.c.b16 %v1654, %v1650
    %v1843 = vpack.c.b16 %v1659, %v1655
    %v1844 = vpack.c.b16 %v1660, %v1656
    %v1845 = vpack.c.b16 %v1661, %v1657
    %v1846 = vpack.c.b16 %v1662, %v1658
    %v1847 = vpack.c.b16 %v1667, %v1663
    %v1848 = vpack.c.b16 %v1668, %v1664
    %v1849 = vpack.c.b16 %v1669, %v1665
    %v1850 = vpack.c.b16 %v1670, %v1666
    %v1851 = vpack.c.b16 %v1675, %v1671
    %v1852 = vpack.c.b16 %v1676, %v1672
    %v1853 = vpack.c.b16 %v1677, %v1673
    %v1854 = vpack.c.b16 %v1678, %v1674
    %v1855 = vpack.c.b16 %v1683, %v1679
    %v1856 = vpack.c.b16 %v1684, %v1680
    %v1857 = vpack.c.b16 %v1685, %v1681
    %v1858 = vpack.c.b16 %v1686, %v1682
    %v1859 = vpack.c.b16 %v1691, %v1687
    %v1860 = vpack.c.b16 %v1692, %v1688
    %v1861 = vpack.c.b16 %v1693, %v1689
    %v1862 = vpack.c.b16 %v1694, %v1690
    %v1863 = vpack.c.b16 %v1699, %v1695
    %v1864 = vpack.c.b16 %v1700, %v1696
    %v1865 = vpack.c.b16 %v1701, %v1697
    %v1866 = vpack.c.b16 %v1702, %v1698
    %v1867 = vpack.c.b16 %v1707, %v1703
    %v1868 = vpack.c.b16 %v1708, %v1704
    %v1869 = vpack.c.b16 %v1709, %v1705
    %v1870 = vpack.c.b16 %v1710, %v1706
    %v1871 = vpack.c.b16 %v1715, %v1711
    %v1872 = vpack.c.b16 %v1716, %v1712
    %v1873 = vpack.c.b16 %v1717, %v1713
    %v1874 = vpack.c.b16 %v1718, %v1714
    %v1875 = vpack.c.b16 %v1723, %v1719
    %v1876 = vpack.c.b16 %v1724, %v1720
    %v1877 = vpack.c.b16 %v1725, %v1721
    %v1878 = vpack.c.b16 %v1726, %v1722
    %v1879 = vpack.c.b16 %v1731, %v1727
    %v1880 = vpack.c.b16 %v1732, %v1728
    %v1881 = vpack.c.b16 %v1733, %v1729
    %v1882 = vpack.c.b16 %v1734, %v1730
    %v1883 = vpack.c.b16 %v1739, %v1735
    %v1884 = vpack.c.b16 %v1740, %v1736
    %v1885 = vpack.c.b16 %v1741, %v1737
    %v1886 = vpack.c.b16 %v1742, %v1738
    %v1887 = vpack.c.b16 %v1747, %v1743
    %v1888 = vpack.c.b16 %v1748, %v1744
    %v1889 = vpack.c.b16 %v1749, %v1745
    %v1890 = vpack.c.b16 %v1750, %v1746
    %v1891 = vpack.c.b16 %v1755, %v1751
    %v1892 = vpack.c.b16 %v1756, %v1752
    %v1893 = vpack.c.b16 %v1757, %v1753
    %v1894 = vpack.c.b16 %v1758, %v1754
    %v1895 = vpack.c.b16 %v1763, %v1759
    %v1896 = vpack.c.b16 %v1764, %v1760
    %v1897 = vpack.c.b16 %v1765, %v1761
    %v1898 = vpack.c.b16 %v1766, %v1762
    %v1899 = vpack.c.b16 %v1771, %v1767
    %v1900 = vpack.c.b16 %v1772, %v1768
    %v1901 = vpack.c.b16 %v1773, %v1769
    %v1902 = vpack.c.b16 %v1774, %v1770
    %2031 = vmatprep.subr.bf16.mxu0 %v1804
    %2032 = vmatpush1.bf16.msra.mxu0 %v1803
    %2033 = vmatprep.subr.bf16.mxu0 %v1800
    %2034 = vmatpush1.bf16.msra.mxu0 %v1799
    %2035 = vmatprep.subr.bf16.mxu0 %v1796
    %2036 = vmatpush1.bf16.msra.mxu0 %v1795
    %2037 = vmatprep.subr.bf16.mxu0 %v1792
    %2038 = vmatpush1.bf16.msra.mxu0 %v1791
    %2039 = vmatprep.subr.bf16.mxu0 %v1788
    %2040 = vmatpush1.bf16.msra.mxu0 %v1787
    %2041 = vmatprep.subr.bf16.mxu0 %v1784
    %2042 = vmatpush1.bf16.msra.mxu0 %v1783
    %2043 = vmatprep.subr.bf16.mxu0 %v1780
    %2044 = vmatpush1.bf16.msra.mxu0 %v1779
    %2045 = vmatprep.subr.bf16.mxu0 %v1776
    %2046 = vmatpush1.bf16.msra.mxu0 %v1775
    %2047 = vmatprep.subr.bf16.mxu0 %v1836
    %2048 = vmatpush2.bf16.msra.mxu0 %v1835
    %2049 = vmatprep.subr.bf16.mxu0 %v1832
    %2050 = vmatpush2.bf16.msra.mxu0 %v1831
    %2051 = vmatprep.subr.bf16.mxu0 %v1828
    %2052 = vmatpush2.bf16.msra.mxu0 %v1827
    %2053 = vmatprep.subr.bf16.mxu0 %v1824
    %2054 = vmatpush2.bf16.msra.mxu0 %v1823
    %2055 = vmatprep.subr.bf16.mxu0 %v1820
    %2056 = vmatpush2.bf16.msra.mxu0 %v1819
    %2057 = vmatprep.subr.bf16.mxu0 %v1816
    %2058 = vmatpush2.bf16.msra.mxu0 %v1815
    %2059 = vmatprep.subr.bf16.mxu0 %v1812
    %2060 = vmatpush2.bf16.msra.mxu0 %v1811
    %2061 = vmatprep.subr.bf16.mxu0 %v1808
    %2062 = vmatpush2.bf16.msra.mxu0 %v1807
    %2063 = vmatprep.mubr.bf16.mxu0 %v1238
    %2064 = vmatmul.mubr.bf16.gmra.mxu0 %v1237
    %v2065 = vpop.f32.mrf.mxu0
    %v2066 = vadd.f32 %v1374, %v2065
    %v2067 = vpop.f32.mrf.mxu0
    %v2068 = vadd.f32 %v1378, %v2067
    %v2069 = vpop.f32.mrf.mxu0
    %v2070 = vadd.f32 %v1374, %v2069
    %v2071 = vpop.f32.mrf.mxu0
    %v2072 = vadd.f32 %v1378, %v2071
    %2073 = vdwg.mxu0
    %2074 = vmatprep.subr.bf16.mxu0 %v1868
    %2075 = vmatpush1.bf16.msra.mxu0 %v1867
    %2076 = vmatprep.subr.bf16.mxu0 %v1864
    %2077 = vmatpush1.bf16.msra.mxu0 %v1863
    %2078 = vmatprep.subr.bf16.mxu0 %v1860
    %2079 = vmatpush1.bf16.msra.mxu0 %v1859
    %2080 = vmatprep.subr.bf16.mxu0 %v1856
    %2081 = vmatpush1.bf16.msra.mxu0 %v1855
    %2082 = vmatprep.subr.bf16.mxu0 %v1852
    %2083 = vmatpush1.bf16.msra.mxu0 %v1851
    %2084 = vmatprep.subr.bf16.mxu0 %v1848
    %2085 = vmatpush1.bf16.msra.mxu0 %v1847
    %2086 = vmatprep.subr.bf16.mxu0 %v1844
    %2087 = vmatpush1.bf16.msra.mxu0 %v1843
    %2088 = vmatprep.subr.bf16.mxu0 %v1840
    %2089 = vmatpush1.bf16.msra.mxu0 %v1839
    %2090 = vmatprep.subr.bf16.mxu0 %v1900
    %2091 = vmatpush2.bf16.msra.mxu0 %v1899
    %2092 = vmatprep.subr.bf16.mxu0 %v1896
    %2093 = vmatpush2.bf16.msra.mxu0 %v1895
    %2094 = vmatprep.subr.bf16.mxu0 %v1892
    %2095 = vmatpush2.bf16.msra.mxu0 %v1891
    %2096 = vmatprep.subr.bf16.mxu0 %v1888
    %2097 = vmatpush2.bf16.msra.mxu0 %v1887
    %2098 = vmatprep.subr.bf16.mxu0 %v1884
    %2099 = vmatpush2.bf16.msra.mxu0 %v1883
    %2100 = vmatprep.subr.bf16.mxu0 %v1880
    %2101 = vmatpush2.bf16.msra.mxu0 %v1879
    %2102 = vmatprep.subr.bf16.mxu0 %v1876
    %2103 = vmatpush2.bf16.msra.mxu0 %v1875
    %2104 = vmatprep.subr.bf16.mxu0 %v1872
    %2105 = vmatpush2.bf16.msra.mxu0 %v1871
    %2106 = vmatprep.mubr.bf16.mxu0 %v1240
    %2107 = vmatmul.mubr.bf16.gmra.mxu0 %v1239
    %v2108 = vpop.f32.mrf.mxu0
    %v2109 = vadd.f32 %v2066, %v2108
    %v2110 = vpop.f32.mrf.mxu0
    %v2111 = vadd.f32 %v2068, %v2110
    %v2112 = vpop.f32.mrf.mxu0
    %v2113 = vadd.f32 %v2070, %v2112
    %v2114 = vpop.f32.mrf.mxu0
    %v2115 = vadd.f32 %v2072, %v2114
    %2116 = vdwg.mxu0
    %2117 = vmatprep.subr.bf16.mxu0 %v1806
    %2118 = vmatpush1.bf16.msra.mxu0 %v1805
    %2119 = vmatprep.subr.bf16.mxu0 %v1802
    %2120 = vmatpush1.bf16.msra.mxu0 %v1801
    %2121 = vmatprep.subr.bf16.mxu0 %v1798
    %2122 = vmatpush1.bf16.msra.mxu0 %v1797
    %2123 = vmatprep.subr.bf16.mxu0 %v1794
    %2124 = vmatpush1.bf16.msra.mxu0 %v1793
    %2125 = vmatprep.subr.bf16.mxu0 %v1790
    %2126 = vmatpush1.bf16.msra.mxu0 %v1789
    %2127 = vmatprep.subr.bf16.mxu0 %v1786
    %2128 = vmatpush1.bf16.msra.mxu0 %v1785
    %2129 = vmatprep.subr.bf16.mxu0 %v1782
    %2130 = vmatpush1.bf16.msra.mxu0 %v1781
    %2131 = vmatprep.subr.bf16.mxu0 %v1778
    %2132 = vmatpush1.bf16.msra.mxu0 %v1777
    %2133 = vmatprep.subr.bf16.mxu0 %v1838
    %2134 = vmatpush2.bf16.msra.mxu0 %v1837
    %2135 = vmatprep.subr.bf16.mxu0 %v1834
    %2136 = vmatpush2.bf16.msra.mxu0 %v1833
    %2137 = vmatprep.subr.bf16.mxu0 %v1830
    %2138 = vmatpush2.bf16.msra.mxu0 %v1829
    %2139 = vmatprep.subr.bf16.mxu0 %v1826
    %2140 = vmatpush2.bf16.msra.mxu0 %v1825
    %2141 = vmatprep.subr.bf16.mxu0 %v1822
    %2142 = vmatpush2.bf16.msra.mxu0 %v1821
    %2143 = vmatprep.subr.bf16.mxu0 %v1818
    %2144 = vmatpush2.bf16.msra.mxu0 %v1817
    %2145 = vmatprep.subr.bf16.mxu0 %v1814
    %2146 = vmatpush2.bf16.msra.mxu0 %v1813
    %2147 = vmatprep.subr.bf16.mxu0 %v1810
    %2148 = vmatpush2.bf16.msra.mxu0 %v1809
    %2149 = vmatprep.mubr.bf16.mxu0 %v1238
    %2150 = vmatmul.mubr.bf16.gmra.mxu0 %v1237
    %v2151 = vpop.f32.mrf.mxu0
    %v2152 = vadd.f32 %v1382, %v2151
    %v2153 = vpop.f32.mrf.mxu0
    %v2154 = vadd.f32 %v1386, %v2153
    %v2155 = vpop.f32.mrf.mxu0
    %v2156 = vadd.f32 %v1382, %v2155
    %v2157 = vpop.f32.mrf.mxu0
    %v2158 = vadd.f32 %v1386, %v2157
    %2159 = vdwg.mxu0
    %2160 = vmatprep.subr.bf16.mxu0 %v1870
    %2161 = vmatpush1.bf16.msra.mxu0 %v1869
    %2162 = vmatprep.subr.bf16.mxu0 %v1866
    %2163 = vmatpush1.bf16.msra.mxu0 %v1865
    %2164 = vmatprep.subr.bf16.mxu0 %v1862
    %2165 = vmatpush1.bf16.msra.mxu0 %v1861
    %2166 = vmatprep.subr.bf16.mxu0 %v1858
    %2167 = vmatpush1.bf16.msra.mxu0 %v1857
    %2168 = vmatprep.subr.bf16.mxu0 %v1854
    %2169 = vmatpush1.bf16.msra.mxu0 %v1853
    %2170 = vmatprep.subr.bf16.mxu0 %v1850
    %2171 = vmatpush1.bf16.msra.mxu0 %v1849
    %2172 = vmatprep.subr.bf16.mxu0 %v1846
    %2173 = vmatpush1.bf16.msra.mxu0 %v1845
    %2174 = vmatprep.subr.bf16.mxu0 %v1842
    %2175 = vmatpush1.bf16.msra.mxu0 %v1841
    %2176 = vmatprep.subr.bf16.mxu0 %v1902
    %2177 = vmatpush2.bf16.msra.mxu0 %v1901
    %2178 = vmatprep.subr.bf16.mxu0 %v1898
    %2179 = vmatpush2.bf16.msra.mxu0 %v1897
    %2180 = vmatprep.subr.bf16.mxu0 %v1894
    %2181 = vmatpush2.bf16.msra.mxu0 %v1893
    %2182 = vmatprep.subr.bf16.mxu0 %v1890
    %2183 = vmatpush2.bf16.msra.mxu0 %v1889
    %2184 = vmatprep.subr.bf16.mxu0 %v1886
    %2185 = vmatpush2.bf16.msra.mxu0 %v1885
    %2186 = vmatprep.subr.bf16.mxu0 %v1882
    %2187 = vmatpush2.bf16.msra.mxu0 %v1881
    %2188 = vmatprep.subr.bf16.mxu0 %v1878
    %2189 = vmatpush2.bf16.msra.mxu0 %v1877
    %2190 = vmatprep.subr.bf16.mxu0 %v1874
    %2191 = vmatpush2.bf16.msra.mxu0 %v1873
    %2192 = vmatprep.mubr.bf16.mxu0 %v1240
    %2193 = vmatmul.mubr.bf16.gmra.mxu0 %v1239
    %v2194 = vpop.f32.mrf.mxu0
    %v2195 = vadd.f32 %v2152, %v2194
    %v2196 = vpop.f32.mrf.mxu0
    %v2197 = vadd.f32 %v2154, %v2196
    %v2198 = vpop.f32.mrf.mxu0
    %v2199 = vadd.f32 %v2156, %v2198
    %v2200 = vpop.f32.mrf.mxu0
    %v2201 = vadd.f32 %v2158, %v2200
    %2202 = vdwg.mxu0
    %v2203 = vmax.f32 %v2109, 0.0
    %v2204 = vmax.f32 %v2111, 0.0
    %v2205 = vmax.f32 %v2195, 0.0
    %v2206 = vmax.f32 %v2197, 0.0
    %v2207 = vmax.f32 %v2113, 0.0
    %v2208 = vmax.f32 %v2115, 0.0
    %v2209 = vmax.f32 %v2199, 0.0
    %v2210 = vmax.f32 %v2201, 0.0
    %v2211 = vpack.c.bf16 %v2207, %v2203
    %v2212 = vpack.c.bf16 %v2208, %v2204
    %v2213 = vpack.c.bf16 %v2209, %v2205
    %v2214 = vpack.c.bf16 %v2210, %v2206
    %v2215 = vld [vmem:[#allocation7] sm:$0xf]
    %v2216 = vld [vmem:[#allocation7 + $0x4] sm:$0xf]
    %v2217 = vld [vmem:[#allocation7 + $0x8] sm:$0xf]
    %v2218 = vld [vmem:[#allocation7 + $0xc] sm:$0xf]
    %v2219 = vld [vmem:[#allocation7 + $0x10] sm:$0xf]
    %v2220 = vld [vmem:[#allocation7 + $0x14] sm:$0xf]
    %v2221 = vld [vmem:[#allocation7 + $0x18] sm:$0xf]
    %v2222 = vld [vmem:[#allocation7 + $0x1c] sm:$0xf]
    %v2223 = vld [vmem:[#allocation7 + $0x20] sm:$0xf]
    %v2224 = vld [vmem:[#allocation7 + $0x24] sm:$0xf]
    %v2225 = vld [vmem:[#allocation7 + $0x28] sm:$0xf]
    %v2226 = vld [vmem:[#allocation7 + $0x2c] sm:$0xf]
    %v2227 = vld [vmem:[#allocation7 + $0x30] sm:$0xf]
    %v2228 = vld [vmem:[#allocation7 + $0x34] sm:$0xf]
    %v2229 = vld [vmem:[#allocation7 + $0x38] sm:$0xf]
    %v2230 = vld [vmem:[#allocation7 + $0x3c] sm:$0xf]
    %v2231 = vld [vmem:[#allocation7 + $0x40] sm:$0xf]
    %v2232 = vld [vmem:[#allocation7 + $0x44] sm:$0xf]
    %v2233 = vld [vmem:[#allocation7 + $0x48] sm:$0xf]
    %v2234 = vld [vmem:[#allocation7 + $0x4c] sm:$0xf]
    %v2235 = vld [vmem:[#allocation7 + $0x50] sm:$0xf]
    %v2236 = vld [vmem:[#allocation7 + $0x54] sm:$0xf]
    %v2237 = vld [vmem:[#allocation7 + $0x58] sm:$0xf]
    %v2238 = vld [vmem:[#allocation7 + $0x5c] sm:$0xf]
    %v2239 = vld [vmem:[#allocation7 + $0x60] sm:$0xf]
    %v2240 = vld [vmem:[#allocation7 + $0x64] sm:$0xf]
    %v2241 = vld [vmem:[#allocation7 + $0x68] sm:$0xf]
    %v2242 = vld [vmem:[#allocation7 + $0x6c] sm:$0xf]
    %v2243 = vld [vmem:[#allocation7 + $0x70] sm:$0xf]
    %v2244 = vld [vmem:[#allocation7 + $0x74] sm:$0xf]
    %v2245 = vld [vmem:[#allocation7 + $0x78] sm:$0xf]
    %v2246 = vld [vmem:[#allocation7 + $0x7c] sm:$0xf]
    %v2247 = vld [vmem:[#allocation7 + $0x80] sm:$0xf]
    %v2248 = vld [vmem:[#allocation7 + $0x84] sm:$0xf]
    %v2249 = vld [vmem:[#allocation7 + $0x88] sm:$0xf]
    %v2250 = vld [vmem:[#allocation7 + $0x8c] sm:$0xf]
    %v2251 = vld [vmem:[#allocation7 + $0x90] sm:$0xf]
    %v2252 = vld [vmem:[#allocation7 + $0x94] sm:$0xf]
    %v2253 = vld [vmem:[#allocation7 + $0x98] sm:$0xf]
    %v2254 = vld [vmem:[#allocation7 + $0x9c] sm:$0xf]
    %v2255 = vld [vmem:[#allocation7 + $0xa0] sm:$0xf]
    %v2256 = vld [vmem:[#allocation7 + $0xa4] sm:$0xf]
    %v2257 = vld [vmem:[#allocation7 + $0xa8] sm:$0xf]
    %v2258 = vld [vmem:[#allocation7 + $0xac] sm:$0xf]
    %v2259 = vld [vmem:[#allocation7 + $0xb0] sm:$0xf]
    %v2260 = vld [vmem:[#allocation7 + $0xb4] sm:$0xf]
    %v2261 = vld [vmem:[#allocation7 + $0xb8] sm:$0xf]
    %v2262 = vld [vmem:[#allocation7 + $0xbc] sm:$0xf]
    %v2263 = vld [vmem:[#allocation7 + $0xc0] sm:$0xf]
    %v2264 = vld [vmem:[#allocation7 + $0xc4] sm:$0xf]
    %v2265 = vld [vmem:[#allocation7 + $0xc8] sm:$0xf]
    %v2266 = vld [vmem:[#allocation7 + $0xcc] sm:$0xf]
    %v2267 = vld [vmem:[#allocation7 + $0xd0] sm:$0xf]
    %v2268 = vld [vmem:[#allocation7 + $0xd4] sm:$0xf]
    %v2269 = vld [vmem:[#allocation7 + $0xd8] sm:$0xf]
    %v2270 = vld [vmem:[#allocation7 + $0xdc] sm:$0xf]
    %v2271 = vld [vmem:[#allocation7 + $0xe0] sm:$0xf]
    %v2272 = vld [vmem:[#allocation7 + $0xe4] sm:$0xf]
    %v2273 = vld [vmem:[#allocation7 + $0xe8] sm:$0xf]
    %v2274 = vld [vmem:[#allocation7 + $0xec] sm:$0xf]
    %v2275 = vld [vmem:[#allocation7 + $0xf0] sm:$0xf]
    %v2276 = vld [vmem:[#allocation7 + $0xf4] sm:$0xf]
    %v2277 = vld [vmem:[#allocation7 + $0xf8] sm:$0xf]
    %v2278 = vld [vmem:[#allocation7 + $0xfc] sm:$0xf]
    %v2279 = vld [vmem:[%s8] sm:$0x1]
    %v2281 = vlaneseq
    %v2282 = vshrl.u32 %v2281, 7
    %v2283 = vsub.s32 0, %v2282
    %v2284 = vrot.slane %v2279, %v2283
    %v2350 = vunpack.c.l.b16 %v2215
    %v2351 = vunpack.c.l.b16 %v2216
    %v2352 = vunpack.c.l.b16 %v2217
    %v2353 = vunpack.c.l.b16 %v2218
    %v2354 = vunpack.c.l.b16 %v2219
    %v2355 = vunpack.c.l.b16 %v2220
    %v2356 = vunpack.c.l.b16 %v2221
    %v2357 = vunpack.c.l.b16 %v2222
    %v2358 = vunpack.c.l.b16 %v2223
    %v2359 = vunpack.c.l.b16 %v2224
    %v2360 = vunpack.c.l.b16 %v2225
    %v2361 = vunpack.c.l.b16 %v2226
    %v2362 = vunpack.c.l.b16 %v2227
    %v2363 = vunpack.c.l.b16 %v2228
    %v2364 = vunpack.c.l.b16 %v2229
    %v2365 = vunpack.c.l.b16 %v2230
    %v2366 = vunpack.c.l.b16 %v2231
    %v2367 = vunpack.c.l.b16 %v2232
    %v2368 = vunpack.c.l.b16 %v2233
    %v2369 = vunpack.c.l.b16 %v2234
    %v2370 = vunpack.c.l.b16 %v2235
    %v2371 = vunpack.c.l.b16 %v2236
    %v2372 = vunpack.c.l.b16 %v2237
    %v2373 = vunpack.c.l.b16 %v2238
    %v2374 = vunpack.c.l.b16 %v2239
    %v2375 = vunpack.c.l.b16 %v2240
    %v2376 = vunpack.c.l.b16 %v2241
    %v2377 = vunpack.c.l.b16 %v2242
    %v2378 = vunpack.c.l.b16 %v2243
    %v2379 = vunpack.c.l.b16 %v2244
    %v2380 = vunpack.c.l.b16 %v2245
    %v2381 = vunpack.c.l.b16 %v2246
    %v2382 = vunpack.c.l.b16 %v2247
    %v2383 = vunpack.c.l.b16 %v2248
    %v2384 = vunpack.c.l.b16 %v2249
    %v2385 = vunpack.c.l.b16 %v2250
    %v2386 = vunpack.c.l.b16 %v2251
    %v2387 = vunpack.c.l.b16 %v2252
    %v2388 = vunpack.c.l.b16 %v2253
    %v2389 = vunpack.c.l.b16 %v2254
    %v2390 = vunpack.c.l.b16 %v2255
    %v2391 = vunpack.c.l.b16 %v2256
    %v2392 = vunpack.c.l.b16 %v2257
    %v2393 = vunpack.c.l.b16 %v2258
    %v2394 = vunpack.c.l.b16 %v2259
    %v2395 = vunpack.c.l.b16 %v2260
    %v2396 = vunpack.c.l.b16 %v2261
    %v2397 = vunpack.c.l.b16 %v2262
    %v2398 = vunpack.c.l.b16 %v2263
    %v2399 = vunpack.c.l.b16 %v2264
    %v2400 = vunpack.c.l.b16 %v2265
    %v2401 = vunpack.c.l.b16 %v2266
    %v2402 = vunpack.c.l.b16 %v2267
    %v2403 = vunpack.c.l.b16 %v2268
    %v2404 = vunpack.c.l.b16 %v2269
    %v2405 = vunpack.c.l.b16 %v2270
    %v2406 = vunpack.c.l.b16 %v2271
    %v2407 = vunpack.c.l.b16 %v2272
    %v2408 = vunpack.c.l.b16 %v2273
    %v2409 = vunpack.c.l.b16 %v2274
    %v2410 = vunpack.c.l.b16 %v2275
    %v2411 = vunpack.c.l.b16 %v2276
    %v2412 = vunpack.c.l.b16 %v2277
    %v2413 = vunpack.c.l.b16 %v2278
    %v2414 = vpack.c.b16 %v2351, %v2350
    %v2415 = vpack.c.b16 %v2353, %v2352
    %v2416 = vpack.c.b16 %v2355, %v2354
    %v2417 = vpack.c.b16 %v2357, %v2356
    %v2418 = vpack.c.b16 %v2359, %v2358
    %v2419 = vpack.c.b16 %v2361, %v2360
    %v2420 = vpack.c.b16 %v2363, %v2362
    %v2421 = vpack.c.b16 %v2365, %v2364
    %v2422 = vpack.c.b16 %v2367, %v2366
    %v2423 = vpack.c.b16 %v2369, %v2368
    %v2424 = vpack.c.b16 %v2371, %v2370
    %v2425 = vpack.c.b16 %v2373, %v2372
    %v2426 = vpack.c.b16 %v2375, %v2374
    %v2427 = vpack.c.b16 %v2377, %v2376
    %v2428 = vpack.c.b16 %v2379, %v2378
    %v2429 = vpack.c.b16 %v2381, %v2380
    %v2430 = vpack.c.b16 %v2383, %v2382
    %v2431 = vpack.c.b16 %v2385, %v2384
    %v2432 = vpack.c.b16 %v2387, %v2386
    %v2433 = vpack.c.b16 %v2389, %v2388
    %v2434 = vpack.c.b16 %v2391, %v2390
    %v2435 = vpack.c.b16 %v2393, %v2392
    %v2436 = vpack.c.b16 %v2395, %v2394
    %v2437 = vpack.c.b16 %v2397, %v2396
    %v2438 = vpack.c.b16 %v2399, %v2398
    %v2439 = vpack.c.b16 %v2401, %v2400
    %v2440 = vpack.c.b16 %v2403, %v2402
    %v2441 = vpack.c.b16 %v2405, %v2404
    %v2442 = vpack.c.b16 %v2407, %v2406
    %v2443 = vpack.c.b16 %v2409, %v2408
    %v2444 = vpack.c.b16 %v2411, %v2410
    %v2445 = vpack.c.b16 %v2413, %v2412
    %2478 = vmatprep.subr.bf16.mxu0 0
    %2479 = vmatpush1.bf16.msra.mxu0 %v2421
    %2480 = vmatprep.subr.bf16.mxu0 0
    %2481 = vmatpush1.bf16.msra.mxu0 %v2420
    %2482 = vmatprep.subr.bf16.mxu0 0
    %2483 = vmatpush1.bf16.msra.mxu0 %v2419
    %2484 = vmatprep.subr.bf16.mxu0 0
    %2485 = vmatpush1.bf16.msra.mxu0 %v2418
    %2486 = vmatprep.subr.bf16.mxu0 0
    %2487 = vmatpush1.bf16.msra.mxu0 %v2417
    %2488 = vmatprep.subr.bf16.mxu0 0
    %2489 = vmatpush1.bf16.msra.mxu0 %v2416
    %2490 = vmatprep.subr.bf16.mxu0 0
    %2491 = vmatpush1.bf16.msra.mxu0 %v2415
    %2492 = vmatprep.subr.bf16.mxu0 0
    %2493 = vmatpush1.bf16.msra.mxu0 %v2414
    %2494 = vmatprep.subr.bf16.mxu0 0
    %2495 = vmatpush2.bf16.msra.mxu0 %v2429
    %2496 = vmatprep.subr.bf16.mxu0 0
    %2497 = vmatpush2.bf16.msra.mxu0 %v2428
    %2498 = vmatprep.subr.bf16.mxu0 0
    %2499 = vmatpush2.bf16.msra.mxu0 %v2427
    %2500 = vmatprep.subr.bf16.mxu0 0
    %2501 = vmatpush2.bf16.msra.mxu0 %v2426
    %2502 = vmatprep.subr.bf16.mxu0 0
    %2503 = vmatpush2.bf16.msra.mxu0 %v2425
    %2504 = vmatprep.subr.bf16.mxu0 0
    %2505 = vmatpush2.bf16.msra.mxu0 %v2424
    %2506 = vmatprep.subr.bf16.mxu0 0
    %2507 = vmatpush2.bf16.msra.mxu0 %v2423
    %2508 = vmatprep.subr.bf16.mxu0 0
    %2509 = vmatpush2.bf16.msra.mxu0 %v2422
    %2510 = vmatprep.mubr.bf16.mxu0 %v2212
    %2511 = vmatmul.mubr.bf16.gmra.mxu0 %v2211
    %v2512 = vpop.f32.mrf.mxu0
    %v2513 = vadd.f32 %v2284, %v2512
    %v2514 = vpop.f32.mrf.mxu0
    %v2515 = vpop.f32.mrf.mxu0
    %v2516 = vadd.f32 %v2284, %v2515
    %v2517 = vpop.f32.mrf.mxu0
    %2518 = vdwg.mxu0
    %2519 = vmatprep.subr.bf16.mxu0 0
    %2520 = vmatpush1.bf16.msra.mxu0 %v2437
    %2521 = vmatprep.subr.bf16.mxu0 0
    %2522 = vmatpush1.bf16.msra.mxu0 %v2436
    %2523 = vmatprep.subr.bf16.mxu0 0
    %2524 = vmatpush1.bf16.msra.mxu0 %v2435
    %2525 = vmatprep.subr.bf16.mxu0 0
    %2526 = vmatpush1.bf16.msra.mxu0 %v2434
    %2527 = vmatprep.subr.bf16.mxu0 0
    %2528 = vmatpush1.bf16.msra.mxu0 %v2433
    %2529 = vmatprep.subr.bf16.mxu0 0
    %2530 = vmatpush1.bf16.msra.mxu0 %v2432
    %2531 = vmatprep.subr.bf16.mxu0 0
    %2532 = vmatpush1.bf16.msra.mxu0 %v2431
    %2533 = vmatprep.subr.bf16.mxu0 0
    %2534 = vmatpush1.bf16.msra.mxu0 %v2430
    %2535 = vmatprep.subr.bf16.mxu0 0
    %2536 = vmatpush2.bf16.msra.mxu0 %v2445
    %2537 = vmatprep.subr.bf16.mxu0 0
    %2538 = vmatpush2.bf16.msra.mxu0 %v2444
    %2539 = vmatprep.subr.bf16.mxu0 0
    %2540 = vmatpush2.bf16.msra.mxu0 %v2443
    %2541 = vmatprep.subr.bf16.mxu0 0
    %2542 = vmatpush2.bf16.msra.mxu0 %v2442
    %2543 = vmatprep.subr.bf16.mxu0 0
    %2544 = vmatpush2.bf16.msra.mxu0 %v2441
    %2545 = vmatprep.subr.bf16.mxu0 0
    %2546 = vmatpush2.bf16.msra.mxu0 %v2440
    %2547 = vmatprep.subr.bf16.mxu0 0
    %2548 = vmatpush2.bf16.msra.mxu0 %v2439
    %2549 = vmatprep.subr.bf16.mxu0 0
    %2550 = vmatpush2.bf16.msra.mxu0 %v2438
    %2551 = vmatprep.mubr.bf16.mxu0 %v2214
    %2552 = vmatmul.mubr.bf16.gmra.mxu0 %v2213
    %v2553 = vpop.f32.mrf.mxu0
    %v2554 = vadd.f32 %v2513, %v2553
    %v2555 = vpop.f32.mrf.mxu0
    %v2556 = vpop.f32.mrf.mxu0
    %v2557 = vadd.f32 %v2516, %v2556
    %v2558 = vpop.f32.mrf.mxu0
    %2559 = vdwg.mxu0
    %2560 = vst [vmem:[%s9] sm:$0xff] %v2554
    %2561 = vst [vmem:[%s9 + $0x8] sm:$0xff] %v2557
    // Predicated region
    $region54: #{titanic_network_forward.1} parent=1 // pred_check
      _
    $region55: #{titanic_network_forward.1} parent=1 // pred_check_branch
      %2563 = sbr.rel (0) target = $region57
    $region56: #{titanic_network_forward.1} parent=1 // pred_region
      _
    $region57: #{titanic_network_forward.1} parent=1 // pred_fallthru
      _
    // Predicated region
    $region58: #{titanic_network_forward.1} parent=1 // pred_check
      _
    $region59: #{titanic_network_forward.1} parent=1 // pred_check_branch
      %2565 = sbr.rel (0) target = $region61
    $region60: #{titanic_network_forward.1} parent=1 // pred_region
      _
    $region61: #{titanic_network_forward.1} parent=1 // pred_fallthru
      _
    %2566 = vsyncpa [#allocation3], 1
    %2567 = vsyncpa [#allocation5], 1
    %2568 = vsyncpa [#allocation8], 1

</llo_original>
